<compile_context>
chip_gen: v7x
topology: tpu7x:2x2x1
jax: 0.10.0
libtpu: 0.0.40
codegen_flags: <defaults>
</compile_context>

<pallas_src>
import functools

import jax
import jax.numpy as jnp
from jax import lax
from jax.experimental import pallas as pl
from jax.experimental.pallas import tpu as pltpu

_EPS = 1e-5  # torch.nn.InstanceNorm2d default


def _pdc_2sd_weights(w):
    """'2sd' pixel-difference transform of (Cout, Cin, 3, 3) weights.

    Matches torch semantics: the RHS reads the *original* weights, then
    indices [0,1,2,3,5,6,7,8] are overwritten and the center tap is zeroed.
    """
    cout, cin = w.shape[0], w.shape[1]
    wf = w.reshape(cout, cin, 9)
    ia = jnp.array([0, 1, 2, 3, 5, 6, 7, 8])
    ib = jnp.array([2, 7, 8, 5, 3, 0, 1, 6])
    ic = jnp.array([1, 4, 5, 4, 4, 3, 4, 7])
    new_vals = wf[..., ia] + wf[..., ib] - 2.0 * wf[..., ic]
    w2 = wf.at[..., ia].set(new_vals)
    w2 = w2.at[..., 4].set(0.0)
    return w2.reshape(cout, cin, 3, 3)


def _adap_conv_kernel(x_ref, w_ref, mask_ref, scale_ref, o_ref, *, h, w):
    """One image per grid step: fused im2col conv + instance norm + relu + gate.

    x_ref     : (Cin, (H+3)*(W+2))  bf16  zero-padded image, spatial flattened
    w_ref     : (9, Cout, Cin)      bf16  per-tap '2sd'-transformed weights
    mask_ref  : (1, H*(W+2))        f32   1.0 on valid columns, 0.0 on wrap cols
    scale_ref : (1, 1)              f32   sigmoid(alpha), in SMEM
    o_ref     : (Cout, H*(W+2))     f32   output slab (wrap cols dropped outside)
    """
    wp = w + 2
    hwp = h * wp
    cout = o_ref.shape[0]

    # 3x3 conv as 9 accumulating MXU matmuls over shifted flat windows of x.
    acc = jnp.zeros((cout, hwp), jnp.float32)
    for t in range(9):
        ki, kj = t // 3, t % 3
        xs = x_ref[:, pl.ds(ki * wp + kj, hwp)]                  # (Cin, hwp)
        acc = acc + jnp.dot(w_ref[t], xs,
                            preferred_element_type=jnp.float32)

    # InstanceNorm2d (affine=False, biased variance) over the valid H*W cols.
    mask = mask_ref[...]                                         # (1, hwp)
    inv_hw = 1.0 / float(h * w)
    mean = jnp.sum(acc * mask, axis=-1, keepdims=True) * inv_hw
    d = acc - mean
    dm = d * mask
    var = jnp.sum(dm * dm, axis=-1, keepdims=True) * inv_hw

    # Fold sigmoid(alpha) into the normalizer; both factors are positive so
    # the scale commutes with ReLU.
    inv = lax.rsqrt(var + _EPS) * scale_ref[0, 0]                # (cout, 1)
    o_ref[...] = (jnp.maximum(d, 0.0) * inv).astype(o_ref.dtype)


@jax.jit
def adap_conv_pallas(x_nchw, w, alpha):
    """adap_conv.forward: relu(instance_norm(conv2d_2sd(x, w))) * sigmoid(alpha)."""
    N, Cin, H, W = x_nchw.shape
    Cout = w.shape[0]
    Wp = W + 2
    HWp = H * Wp
    # Pad H by (1, 2): the extra zero row at the bottom keeps every shifted
    # flat window in bounds; it is never read by a valid output column.
    Lflat = (H + 3) * Wp

    # '2sd' weight transform (pure data movement), per-tap layout, bf16 operands.
    w_taps = (_pdc_2sd_weights(w.astype(jnp.float32))
              .reshape(Cout, Cin, 9).transpose(2, 0, 1)
              .astype(jnp.bfloat16))                              # (9, Cout, Cin)

    # Single zero-pad of x (read once per image inside the kernel), flat spatial.
    x_flat = jnp.pad(x_nchw, ((0, 0), (0, 0), (1, 2), (1, 1)))
    x_flat = x_flat.reshape(N, Cin, Lflat).astype(jnp.bfloat16)   # (N, Cin, Lflat)

    # Valid-column mask: columns w >= W within each row of width Wp are the
    # wrap-around columns and must not enter the instance-norm statistics.
    mask = ((jnp.arange(HWp, dtype=jnp.int32) % Wp) < W)
    mask = mask.astype(jnp.float32).reshape(1, HWp)

    scale = jax.nn.sigmoid(alpha.astype(jnp.float32)).reshape(1, 1)

    kernel = functools.partial(_adap_conv_kernel, h=H, w=W)

    cost = pl.CostEstimate(
        flops=2 * N * Cout * Cin * 9 * HWp,
        transcendentals=N * Cout,
        bytes_accessed=(2 * (N * Cin * Lflat + 9 * Cout * Cin)
                        + 4 * (N * Cout * HWp + HWp + 1)),
    )

    out_flat = pl.pallas_call(
        kernel,
        out_shape=jax.ShapeDtypeStruct((N, Cout, HWp), jnp.float32),
        grid_spec=pltpu.PrefetchScalarGridSpec(
            num_scalar_prefetch=0,
            grid=(N,),
            in_specs=[
                pl.BlockSpec((None, Cin, Lflat), lambda n: (n, 0, 0)),   # x[n]
                pl.BlockSpec((9, Cout, Cin), lambda n: (0, 0, 0)),       # weights
                pl.BlockSpec((1, HWp), lambda n: (0, 0)),                # mask
                pl.BlockSpec(memory_space=pltpu.MemorySpace.SMEM),       # sigmoid(alpha)
            ],
            out_specs=pl.BlockSpec((None, Cout, HWp), lambda n: (n, 0, 0)),
        ),
        compiler_params=pltpu.CompilerParams(
            dimension_semantics=("parallel",),       # batch over v7x's 2 TCs
            vmem_limit_bytes=48 * 1024 * 1024,       # above scoped default, < v7x 64 MiB
        ),
        cost_estimate=cost,
    )(x_flat, w_taps, mask, scale)

    # Drop the two wrap-around columns per row; the reshape is free (contiguous).
    return out_flat.reshape(N, Cout, H, Wp)[:, :, :, :W]


def adap_conv_reference(x_nchw, w, alpha, operand_dtype=jnp.float32):
    """Pure-JAX reference (lax conv + instance norm + relu + sigmoid gate).

    operand_dtype=bfloat16 reproduces the kernel's bf16 MXU operands
    (with f32 accumulation) for a tight numerical comparison.
    """
    w2 = _pdc_2sd_weights(w.astype(jnp.float32))
    w2 = w2.astype(operand_dtype).astype(jnp.float32)
    xq = x_nchw.astype(operand_dtype).astype(jnp.float32)
    dn = lax.conv_dimension_numbers(xq.shape, w2.shape, ("NCHW", "OIHW", "NCHW"))
    y = lax.conv_general_dilated(xq, w2, window_strides=(1, 1),
                                 padding=((1, 1), (1, 1)),
                                 dimension_numbers=dn)
    mean = jnp.mean(y, axis=(2, 3), keepdims=True)
    var = jnp.var(y, axis=(2, 3), keepdims=True)     # biased, like torch IN
    yn = (y - mean) / jnp.sqrt(var + _EPS)
    return jax.nn.relu(yn) * jax.nn.sigmoid(alpha)


if __name__ == "__main__":
    # Small deterministic setup consistent with the module: N=2, Cin=4, H=W=16, Cout=8.
    N, Cin, H, W, Cout = 2, 4, 16, 16, 8
    key = jax.random.PRNGKey(0)
    kx, kw = jax.random.split(key, 2)

    x = jax.random.normal(kx, (N, Cin, H, W), dtype=jnp.float32)
    # Kaiming-uniform-like scale for the conv weight (deterministic, not a checkpoint).
    fan_in = Cin * 3 * 3
    bound = 1.0 / (fan_in ** 0.5)
    w = jax.random.uniform(kw, (Cout, Cin, 3, 3), jnp.float32, -bound, bound)
    alpha = jnp.zeros((1,), jnp.float32)   # module init: nn.Parameter(torch.Tensor([0.0]))

    out = jax.block_until_ready(adap_conv_pallas(x, w, alpha))
    assert out.shape == (N, Cout, H, W), out.shape

    # Tight check against a reference using the same bf16-rounded MXU operands.
    ref_q = jax.block_until_ready(
        adap_conv_reference(x, w, alpha, operand_dtype=jnp.bfloat16))
    err_q = float(jnp.max(jnp.abs(out - ref_q)))
    assert jnp.allclose(out, ref_q, atol=2e-3, rtol=2e-3), err_q

    # Sanity check against the full-f32 reference (bounded by bf16 quantization).
    ref_f = jax.block_until_ready(adap_conv_reference(x, w, alpha))
    err_f = float(jnp.max(jnp.abs(out - ref_f)))
    assert jnp.allclose(out, ref_f, atol=5e-2, rtol=5e-2), err_f

    print("KERNEL_OK")
</pallas_src>

<mosaic_0001>
module attributes {stable_mosaic.version = 11 : i64} {
  func.func @_adap_conv_kernel(%arg0: i32, %arg1: memref<1x4x342xbf16, #tpu.memory_space<vmem>>, %arg2: memref<9x8x4xbf16, #tpu.memory_space<vmem>>, %arg3: memref<1x288xf32, #tpu.memory_space<vmem>>, %arg4: memref<1x1xf32, #tpu.memory_space<smem>>, %arg5: memref<1x8x288xf32, #tpu.memory_space<vmem>>) attributes {dimension_semantics = [#tpu.dimension_semantics<parallel>], iteration_bounds = array<i64: 2>, scalar_prefetch = 0 : i64, scratch_operands = 0 : i64, tpu.core_type = #tpu.core_type<tc>, window_params = [{transform_indices = @transform_0, window_bounds = array<i64: 1, 4, 342>}, {pipeline_mode = #tpu.pipeline_mode<synchronous>, transform_indices = @transform_1, window_bounds = array<i64: 9, 8, 4>}, {pipeline_mode = #tpu.pipeline_mode<synchronous>, transform_indices = @transform_2, window_bounds = array<i64: 1, 288>}, {transform_indices = @transform_3, window_bounds = array<i64: 1, 1>}, {transform_indices = @transform_4, window_bounds = array<i64: 1, 8, 288>}]} {
    %cst = arith.constant 0.000000e+00 : f32
    %0 = vector.broadcast %cst : f32 to vector<8x288xf32>
    %c0 = arith.constant 0 : index
    %c0_0 = arith.constant 0 : index
    %c0_1 = arith.constant 0 : index
    %1 = vector.load %arg1[%c0, %c0_0, %c0_1] : memref<1x4x342xbf16, #tpu.memory_space<vmem>>, vector<1x4x288xbf16>
    %2 = vector.shape_cast %1 : vector<1x4x288xbf16> to vector<4x288xbf16>
    %c0_2 = arith.constant 0 : index
    %c0_3 = arith.constant 0 : index
    %c0_4 = arith.constant 0 : index
    %3 = vector.load %arg2[%c0_2, %c0_3, %c0_4] : memref<9x8x4xbf16, #tpu.memory_space<vmem>>, vector<1x8x4xbf16>
    %4 = vector.shape_cast %3 : vector<1x8x4xbf16> to vector<8x4xbf16>
    %cst_5 = arith.constant dense<0.000000e+00> : vector<8x288xf32>
    %5 = tpu.matmul %4, %2, %cst_5 {dimension_numbers = #tpu.dot_dimension_numbers<[1], [0], [0], [1], [0, 0, 1, 1], [], []>} : vector<8x4xbf16>, vector<4x288xbf16>, vector<8x288xf32> -> vector<8x288xf32>
    %6 = arith.addf %0, %5 : vector<8x288xf32>
    %c0_6 = arith.constant 0 : index
    %c0_7 = arith.constant 0 : index
    %c1 = arith.constant 1 : index
    %7 = vector.load %arg1[%c0_6, %c0_7, %c1] : memref<1x4x342xbf16, #tpu.memory_space<vmem>>, vector<1x4x288xbf16>
    %8 = vector.shape_cast %7 : vector<1x4x288xbf16> to vector<4x288xbf16>
    %c1_8 = arith.constant 1 : index
    %c0_9 = arith.constant 0 : index
    %c0_10 = arith.constant 0 : index
    %9 = vector.load %arg2[%c1_8, %c0_9, %c0_10] : memref<9x8x4xbf16, #tpu.memory_space<vmem>>, vector<1x8x4xbf16>
    %10 = vector.shape_cast %9 : vector<1x8x4xbf16> to vector<8x4xbf16>
    %cst_11 = arith.constant dense<0.000000e+00> : vector<8x288xf32>
    %11 = tpu.matmul %10, %8, %cst_11 {dimension_numbers = #tpu.dot_dimension_numbers<[1], [0], [0], [1], [0, 0, 1, 1], [], []>} : vector<8x4xbf16>, vector<4x288xbf16>, vector<8x288xf32> -> vector<8x288xf32>
    %12 = arith.addf %6, %11 : vector<8x288xf32>
    %c0_12 = arith.constant 0 : index
    %c0_13 = arith.constant 0 : index
    %c2 = arith.constant 2 : index
    %13 = vector.load %arg1[%c0_12, %c0_13, %c2] : memref<1x4x342xbf16, #tpu.memory_space<vmem>>, vector<1x4x288xbf16>
    %14 = vector.shape_cast %13 : vector<1x4x288xbf16> to vector<4x288xbf16>
    %c2_14 = arith.constant 2 : index
    %c0_15 = arith.constant 0 : index
    %c0_16 = arith.constant 0 : index
    %15 = vector.load %arg2[%c2_14, %c0_15, %c0_16] : memref<9x8x4xbf16, #tpu.memory_space<vmem>>, vector<1x8x4xbf16>
    %16 = vector.shape_cast %15 : vector<1x8x4xbf16> to vector<8x4xbf16>
    %cst_17 = arith.constant dense<0.000000e+00> : vector<8x288xf32>
    %17 = tpu.matmul %16, %14, %cst_17 {dimension_numbers = #tpu.dot_dimension_numbers<[1], [0], [0], [1], [0, 0, 1, 1], [], []>} : vector<8x4xbf16>, vector<4x288xbf16>, vector<8x288xf32> -> vector<8x288xf32>
    %18 = arith.addf %12, %17 : vector<8x288xf32>
    %c0_18 = arith.constant 0 : index
    %c0_19 = arith.constant 0 : index
    %c18 = arith.constant 18 : index
    %19 = vector.load %arg1[%c0_18, %c0_19, %c18] : memref<1x4x342xbf16, #tpu.memory_space<vmem>>, vector<1x4x288xbf16>
    %20 = vector.shape_cast %19 : vector<1x4x288xbf16> to vector<4x288xbf16>
    %c3 = arith.constant 3 : index
    %c0_20 = arith.constant 0 : index
    %c0_21 = arith.constant 0 : index
    %21 = vector.load %arg2[%c3, %c0_20, %c0_21] : memref<9x8x4xbf16, #tpu.memory_space<vmem>>, vector<1x8x4xbf16>
    %22 = vector.shape_cast %21 : vector<1x8x4xbf16> to vector<8x4xbf16>
    %cst_22 = arith.constant dense<0.000000e+00> : vector<8x288xf32>
    %23 = tpu.matmul %22, %20, %cst_22 {dimension_numbers = #tpu.dot_dimension_numbers<[1], [0], [0], [1], [0, 0, 1, 1], [], []>} : vector<8x4xbf16>, vector<4x288xbf16>, vector<8x288xf32> -> vector<8x288xf32>
    %24 = arith.addf %18, %23 : vector<8x288xf32>
    %c0_23 = arith.constant 0 : index
    %c0_24 = arith.constant 0 : index
    %c19 = arith.constant 19 : index
    %25 = vector.load %arg1[%c0_23, %c0_24, %c19] : memref<1x4x342xbf16, #tpu.memory_space<vmem>>, vector<1x4x288xbf16>
    %26 = vector.shape_cast %25 : vector<1x4x288xbf16> to vector<4x288xbf16>
    %c4 = arith.constant 4 : index
    %c0_25 = arith.constant 0 : index
    %c0_26 = arith.constant 0 : index
    %27 = vector.load %arg2[%c4, %c0_25, %c0_26] : memref<9x8x4xbf16, #tpu.memory_space<vmem>>, vector<1x8x4xbf16>
    %28 = vector.shape_cast %27 : vector<1x8x4xbf16> to vector<8x4xbf16>
    %cst_27 = arith.constant dense<0.000000e+00> : vector<8x288xf32>
    %29 = tpu.matmul %28, %26, %cst_27 {dimension_numbers = #tpu.dot_dimension_numbers<[1], [0], [0], [1], [0, 0, 1, 1], [], []>} : vector<8x4xbf16>, vector<4x288xbf16>, vector<8x288xf32> -> vector<8x288xf32>
    %30 = arith.addf %24, %29 : vector<8x288xf32>
    %c0_28 = arith.constant 0 : index
    %c0_29 = arith.constant 0 : index
    %c20 = arith.constant 20 : index
    %31 = vector.load %arg1[%c0_28, %c0_29, %c20] : memref<1x4x342xbf16, #tpu.memory_space<vmem>>, vector<1x4x288xbf16>
    %32 = vector.shape_cast %31 : vector<1x4x288xbf16> to vector<4x288xbf16>
    %c5 = arith.constant 5 : index
    %c0_30 = arith.constant 0 : index
    %c0_31 = arith.constant 0 : index
    %33 = vector.load %arg2[%c5, %c0_30, %c0_31] : memref<9x8x4xbf16, #tpu.memory_space<vmem>>, vector<1x8x4xbf16>
    %34 = vector.shape_cast %33 : vector<1x8x4xbf16> to vector<8x4xbf16>
    %cst_32 = arith.constant dense<0.000000e+00> : vector<8x288xf32>
    %35 = tpu.matmul %34, %32, %cst_32 {dimension_numbers = #tpu.dot_dimension_numbers<[1], [0], [0], [1], [0, 0, 1, 1], [], []>} : vector<8x4xbf16>, vector<4x288xbf16>, vector<8x288xf32> -> vector<8x288xf32>
    %36 = arith.addf %30, %35 : vector<8x288xf32>
    %c0_33 = arith.constant 0 : index
    %c0_34 = arith.constant 0 : index
    %c36 = arith.constant 36 : index
    %37 = vector.load %arg1[%c0_33, %c0_34, %c36] : memref<1x4x342xbf16, #tpu.memory_space<vmem>>, vector<1x4x288xbf16>
    %38 = vector.shape_cast %37 : vector<1x4x288xbf16> to vector<4x288xbf16>
    %c6 = arith.constant 6 : index
    %c0_35 = arith.constant 0 : index
    %c0_36 = arith.constant 0 : index
    %39 = vector.load %arg2[%c6, %c0_35, %c0_36] : memref<9x8x4xbf16, #tpu.memory_space<vmem>>, vector<1x8x4xbf16>
    %40 = vector.shape_cast %39 : vector<1x8x4xbf16> to vector<8x4xbf16>
    %cst_37 = arith.constant dense<0.000000e+00> : vector<8x288xf32>
    %41 = tpu.matmul %40, %38, %cst_37 {dimension_numbers = #tpu.dot_dimension_numbers<[1], [0], [0], [1], [0, 0, 1, 1], [], []>} : vector<8x4xbf16>, vector<4x288xbf16>, vector<8x288xf32> -> vector<8x288xf32>
    %42 = arith.addf %36, %41 : vector<8x288xf32>
    %c0_38 = arith.constant 0 : index
    %c0_39 = arith.constant 0 : index
    %c37 = arith.constant 37 : index
    %43 = vector.load %arg1[%c0_38, %c0_39, %c37] : memref<1x4x342xbf16, #tpu.memory_space<vmem>>, vector<1x4x288xbf16>
    %44 = vector.shape_cast %43 : vector<1x4x288xbf16> to vector<4x288xbf16>
    %c7 = arith.constant 7 : index
    %c0_40 = arith.constant 0 : index
    %c0_41 = arith.constant 0 : index
    %45 = vector.load %arg2[%c7, %c0_40, %c0_41] : memref<9x8x4xbf16, #tpu.memory_space<vmem>>, vector<1x8x4xbf16>
    %46 = vector.shape_cast %45 : vector<1x8x4xbf16> to vector<8x4xbf16>
    %cst_42 = arith.constant dense<0.000000e+00> : vector<8x288xf32>
    %47 = tpu.matmul %46, %44, %cst_42 {dimension_numbers = #tpu.dot_dimension_numbers<[1], [0], [0], [1], [0, 0, 1, 1], [], []>} : vector<8x4xbf16>, vector<4x288xbf16>, vector<8x288xf32> -> vector<8x288xf32>
    %48 = arith.addf %42, %47 : vector<8x288xf32>
    %c0_43 = arith.constant 0 : index
    %c0_44 = arith.constant 0 : index
    %c38 = arith.constant 38 : index
    %49 = vector.load %arg1[%c0_43, %c0_44, %c38] : memref<1x4x342xbf16, #tpu.memory_space<vmem>>, vector<1x4x288xbf16>
    %50 = vector.shape_cast %49 : vector<1x4x288xbf16> to vector<4x288xbf16>
    %c8 = arith.constant 8 : index
    %c0_45 = arith.constant 0 : index
    %c0_46 = arith.constant 0 : index
    %51 = vector.load %arg2[%c8, %c0_45, %c0_46] : memref<9x8x4xbf16, #tpu.memory_space<vmem>>, vector<1x8x4xbf16>
    %52 = vector.shape_cast %51 : vector<1x8x4xbf16> to vector<8x4xbf16>
    %cst_47 = arith.constant dense<0.000000e+00> : vector<8x288xf32>
    %53 = tpu.matmul %52, %50, %cst_47 {dimension_numbers = #tpu.dot_dimension_numbers<[1], [0], [0], [1], [0, 0, 1, 1], [], []>} : vector<8x4xbf16>, vector<4x288xbf16>, vector<8x288xf32> -> vector<8x288xf32>
    %54 = arith.addf %48, %53 : vector<8x288xf32>
    %c0_48 = arith.constant 0 : index
    %c0_49 = arith.constant 0 : index
    %55 = vector.load %arg3[%c0_48, %c0_49] : memref<1x288xf32, #tpu.memory_space<vmem>>, vector<1x288xf32>
    %56 = vector.broadcast %55 : vector<1x288xf32> to vector<8x288xf32>
    %57 = arith.mulf %54, %56 : vector<8x288xf32>
    %cst_50 = arith.constant dense<0.000000e+00> : vector<8xf32>
    %58 = vector.multi_reduction <add>, %57, %cst_50 [1] : vector<8x288xf32> to vector<8xf32>
    %59 = vector.shape_cast %58 : vector<8xf32> to vector<8x1xf32>
    %cst_51 = arith.constant 3.906250e-03 : f32
    %60 = vector.broadcast %cst_51 : f32 to vector<8x1xf32>
    %61 = arith.mulf %59, %60 : vector<8x1xf32>
    %62 = vector.broadcast %61 : vector<8x1xf32> to vector<8x288xf32>
    %63 = arith.subf %54, %62 : vector<8x288xf32>
    %64 = vector.broadcast %55 : vector<1x288xf32> to vector<8x288xf32>
    %65 = arith.mulf %63, %64 : vector<8x288xf32>
    %66 = arith.mulf %65, %65 : vector<8x288xf32>
    %cst_52 = arith.constant dense<0.000000e+00> : vector<8xf32>
    %67 = vector.multi_reduction <add>, %66, %cst_52 [1] : vector<8x288xf32> to vector<8xf32>
    %68 = vector.shape_cast %67 : vector<8xf32> to vector<8x1xf32>
    %cst_53 = arith.constant 3.906250e-03 : f32
    %69 = vector.broadcast %cst_53 : f32 to vector<8x1xf32>
    %70 = arith.mulf %68, %69 : vector<8x1xf32>
    %cst_54 = arith.constant 9.99999974E-6 : f32
    %71 = vector.broadcast %cst_54 : f32 to vector<8x1xf32>
    %72 = arith.addf %70, %71 : vector<8x1xf32>
    %73 = math.rsqrt %72 : vector<8x1xf32>
    %c0_55 = arith.constant 0 : index
    %c0_56 = arith.constant 0 : index
    %74 = memref.load %arg4[%c0_55, %c0_56] : memref<1x1xf32, #tpu.memory_space<smem>>
    %75 = vector.broadcast %74 : f32 to vector<8x1xf32>
    %76 = arith.mulf %73, %75 : vector<8x1xf32>
    %cst_57 = arith.constant 0.000000e+00 : f32
    %77 = vector.broadcast %cst_57 : f32 to vector<8x288xf32>
    %78 = arith.maximumf %63, %77 : vector<8x288xf32>
    %79 = vector.broadcast %76 : vector<8x1xf32> to vector<8x288xf32>
    %80 = arith.mulf %78, %79 : vector<8x288xf32>
    %c0_58 = arith.constant 0 : index
    %c0_59 = arith.constant 0 : index
    %c0_60 = arith.constant 0 : index
    %81 = vector.load %arg5[%c0_58, %c0_59, %c0_60] : memref<1x8x288xf32, #tpu.memory_space<vmem>>, vector<1x8x288xf32>
    %82 = vector.shape_cast %81 : vector<1x8x288xf32> to vector<8x288xf32>
    %83 = vector.shape_cast %80 : vector<8x288xf32> to vector<1x8x288xf32>
    tpu.vector_store %arg5[%c0_58, %c0_59, %c0_60], %83 {strides = array<i32>} : memref<1x8x288xf32, #tpu.memory_space<vmem>>, vector<1x8x288xf32>,
    return
  }
  func.func @transform_0(%arg0: i32) -> (i32, i32, i32) {
    %c0_i32 = arith.constant 0 : i32
    %c0_i32_0 = arith.constant 0 : i32
    %c0_i32_1 = arith.constant 0 : i32
    return %arg0, %c0_i32, %c0_i32_0 : i32, i32, i32
  }
  func.func @transform_1(%arg0: i32) -> (i32, i32, i32) {
    %c0_i32 = arith.constant 0 : i32
    %c0_i32_0 = arith.constant 0 : i32
    %c0_i32_1 = arith.constant 0 : i32
    %c0_i32_2 = arith.constant 0 : i32
    return %c0_i32, %c0_i32_0, %c0_i32_1 : i32, i32, i32
  }
  func.func @transform_2(%arg0: i32) -> (i32, i32) {
    %c0_i32 = arith.constant 0 : i32
    %c0_i32_0 = arith.constant 0 : i32
    %c0_i32_1 = arith.constant 0 : i32
    return %c0_i32, %c0_i32_0 : i32, i32
  }
  func.func @transform_3(%arg0: i32) -> (i32, i32) {
    %c0_i32 = arith.constant 0 : i32
    %c0_i32_0 = arith.constant 0 : i32
    %c0_i32_1 = arith.constant 0 : i32
    return %c0_i32, %c0_i32_0 : i32, i32
  }
  func.func @transform_4(%arg0: i32) -> (i32, i32, i32) {
    %c0_i32 = arith.constant 0 : i32
    %c0_i32_0 = arith.constant 0 : i32
    %c0_i32_1 = arith.constant 0 : i32
    return %arg0, %c0_i32, %c0_i32_0 : i32, i32, i32
  }
}

</mosaic_0001>

<llo_original>
// kernel: adap_conv_pallas.1
$region0: #{adap_conv_pallas.1}
  #allocation0 [shape = 'u32[]', space=smem, size = 0x4, offset = 0x4, fixed_abs, tag = 'smem constant byte address 0x4 - core index']
  #allocation1 [shape = 'u32[144,128]{1,0:T(1,128)}', space=vmem, size = 0x12000, scoped, tag = 'internal scratch']
  #allocation2 [shape = 'f32[1,1]{1,0:T(1,128)S(6)}', space=smem, size = 0x200, scoped, tag = 'scoped memory for adap_conv_pallas.1']
  %s0 = inlined_call_operand.vmem [shape: bf16[2,4,342], index: 0, kind: input, shape index: {}]
  %s1 = inlined_call_operand.vmem [shape: bf16[9,8,4], index: 1, kind: input, shape index: {}]
  %s2 = inlined_call_operand.vmem [shape: f32[1,288], index: 2, kind: input, shape index: {}]
  %s3 = inlined_call_operand.<no memory space> [shape: f32[1,1], index: 3, kind: input, shape index: {}]
  %s4 = inlined_call_operand.vmem [shape: f32[2,8,288], index: 4, kind: output, shape index: {}]
  %s5 = sld [smem:[#allocation0]]
  $region49: #{adap_conv_pallas.1} parent=0
    _
  %s7 = ssub.s32 1, %s5
  %s8 = scalar_select 0, %s7, %s5
  %9 = sst [smem:[#allocation2]] %s3
  loop: start=0, step=1, limit=4
  $region2: #{adap_conv_pallas.1} parent=0 // loop_pre_header
    _
  $region3: #{adap_conv_pallas.1} parent=0 // loop_header
    %s11 = sphi 0, %s15
    %p12 = scmp.ge.s32.totalorder %s11, 4
    %s21 = sphi 0, %s23
    %s24 = sphi 0, %s21
    %s25 = sphi 0, %s24
    %s41 = sphi 0, %s25
    %s45 = sphi 0, %s45
    %s47 = sphi 0, %s45
    %s48 = sphi 0, %s47
    %s62 = sphi 0, %s48
    %s66 = sphi 0, %s66
    %s68 = sphi 0, %s66
    %s69 = sphi 0, %s68
    %s83 = sphi 0, %s69
    %s87 = sphi 0, %s87
    %s89 = sphi 0, %s87
    %s90 = sphi 0, %s89
    %s104 = sphi 0, %s90
    %s110 = sphi 0, %s112
    %s113 = sphi 0, %s110
    %s114 = sphi 0, %s113
    %s130 = sphi 0, %s114
  $region4: #{adap_conv_pallas.1} parent=0 // loop_header_branch
    %14 = sbr.rel (%p12) target = $region8
  $region5: #{adap_conv_pallas.1} parent=0 // loop_body
    %s16 = ssub.s32 %s11, 1
    %s17 = ssub.s32 %s11, 2
    %s18 = sadd.s32 %s11, 1
    %s19 = ssub.s32 %s11, %s18
    %p20 = scmp.eq.s32.totalorder %s19, 0
    %s22 = sadd.s32 %s21, 1
    %s23 = scalar_select %p20, %s21, %s22
    %p26 = pneg %p20
    %p27 = scmp.eq.s32.totalorder %s11, 1
    %p28 = por %p26, %p27
    %p29 = scmp.ne.s32.totalorder %s21, %s24
    %p30 = scmp.eq.s32.totalorder %s11, 0
    %p31 = por %p29, %p30
    %p32 = scmp.ne.s32.totalorder %s21, %s24
    %p33 = scmp.eq.s32.totalorder %s16, 1
    %p34 = por %p32, %p33
    %p35 = scmp.ne.s32.totalorder %s24, %s25
    %p36 = scmp.eq.s32.totalorder %s16, 0
    %p37 = por %p35, %p36
    %p38 = scmp.ne.s32.totalorder %s24, %s25
    %p39 = scmp.eq.s32.totalorder %s17, 1
    %p40 = por %p38, %p39
    %p42 = scmp.ne.s32.totalorder %s25, %s41
    %p43 = scmp.eq.s32.totalorder %s17, 0
    %p44 = por %p42, %p43
    %s46 = sadd.s32 %s45, 1
    %p49 = scmp.eq.s32.totalorder %s11, 1
    %p50 = scmp.ne.s32.totalorder %s45, %s47
    %p51 = scmp.eq.s32.totalorder %s11, 0
    %p52 = por %p50, %p51
    %p53 = scmp.ne.s32.totalorder %s45, %s47
    %p54 = scmp.eq.s32.totalorder %s16, 1
    %p55 = por %p53, %p54
    %p56 = scmp.ne.s32.totalorder %s47, %s48
    %p57 = scmp.eq.s32.totalorder %s16, 0
    %p58 = por %p56, %p57
    %p59 = scmp.ne.s32.totalorder %s47, %s48
    %p60 = scmp.eq.s32.totalorder %s17, 1
    %p61 = por %p59, %p60
    %p63 = scmp.ne.s32.totalorder %s48, %s62
    %p64 = scmp.eq.s32.totalorder %s17, 0
    %p65 = por %p63, %p64
    %s67 = sadd.s32 %s66, 1
    %p70 = scmp.eq.s32.totalorder %s11, 1
    %p71 = scmp.ne.s32.totalorder %s66, %s68
    %p72 = scmp.eq.s32.totalorder %s11, 0
    %p73 = por %p71, %p72
    %p74 = scmp.ne.s32.totalorder %s66, %s68
    %p75 = scmp.eq.s32.totalorder %s16, 1
    %p76 = por %p74, %p75
    %p77 = scmp.ne.s32.totalorder %s68, %s69
    %p78 = scmp.eq.s32.totalorder %s16, 0
    %p79 = por %p77, %p78
    %p80 = scmp.ne.s32.totalorder %s68, %s69
    %p81 = scmp.eq.s32.totalorder %s17, 1
    %p82 = por %p80, %p81
    %p84 = scmp.ne.s32.totalorder %s69, %s83
    %p85 = scmp.eq.s32.totalorder %s17, 0
    %p86 = por %p84, %p85
    %s88 = sadd.s32 %s87, 1
    %p91 = scmp.eq.s32.totalorder %s11, 1
    %p92 = scmp.ne.s32.totalorder %s87, %s89
    %p93 = scmp.eq.s32.totalorder %s11, 0
    %p94 = por %p92, %p93
    %p95 = scmp.ne.s32.totalorder %s87, %s89
    %p96 = scmp.eq.s32.totalorder %s16, 1
    %p97 = por %p95, %p96
    %p98 = scmp.ne.s32.totalorder %s89, %s90
    %p99 = scmp.eq.s32.totalorder %s16, 0
    %p100 = por %p98, %p99
    %p101 = scmp.ne.s32.totalorder %s89, %s90
    %p102 = scmp.eq.s32.totalorder %s17, 1
    %p103 = por %p101, %p102
    %p105 = scmp.ne.s32.totalorder %s90, %s104
    %p106 = scmp.eq.s32.totalorder %s17, 0
    %p107 = por %p105, %p106
    %s108 = ssub.s32 %s11, %s18
    %p109 = scmp.eq.s32.totalorder %s108, 0
    %s111 = sadd.s32 %s110, 1
    %s112 = scalar_select %p109, %s110, %s111
    %p115 = pneg %p109
    %p116 = scmp.eq.s32.totalorder %s11, 1
    %p117 = por %p115, %p116
    %p118 = scmp.ne.s32.totalorder %s110, %s113
    %p119 = scmp.eq.s32.totalorder %s11, 0
    %p120 = por %p118, %p119
    %p121 = scmp.ne.s32.totalorder %s110, %s113
    %p122 = scmp.eq.s32.totalorder %s16, 1
    %p123 = por %p121, %p122
    %p124 = scmp.ne.s32.totalorder %s113, %s114
    %p125 = scmp.eq.s32.totalorder %s16, 0
    %p126 = por %p124, %p125
    %p127 = scmp.ne.s32.totalorder %s113, %s114
    %p128 = scmp.eq.s32.totalorder %s17, 1
    %p129 = por %p127, %p128
    %p131 = scmp.ne.s32.totalorder %s114, %s130
    %p132 = scmp.eq.s32.totalorder %s17, 0
    %p133 = por %p131, %p132
    %p134 = scmp.le.s32.totalorder 1, %s11
    %p135 = scmp.lt.s32.totalorder %s11, 3
    %p136 = pnand %p134, %p135
    %p137 = pneg %p136
    // Predicated region
    $region9: #{adap_conv_pallas.1} parent=5 // pred_check
      _
    $region10: #{adap_conv_pallas.1} parent=5 // pred_check_branch
      %139 = sbr.rel (%p136) target = $region12
    $region11: #{adap_conv_pallas.1} parent=5 // pred_region
      %s140 = ssub.s32 %s11, 1
      // Predicated region
      $region13: #{adap_conv_pallas.1} parent=11 // pred_check
        %p141 = pneg %p58
      $region14: #{adap_conv_pallas.1} parent=11 // pred_check_branch
        %143 = sbr.rel (%p141) target = $region16
      $region15: #{adap_conv_pallas.1} parent=11 // pred_region
        _
      $region16: #{adap_conv_pallas.1} parent=11 // pred_fallthru
        _
      // Predicated region
      $region17: #{adap_conv_pallas.1} parent=11 // pred_check
        %p144 = pneg %p79
      $region18: #{adap_conv_pallas.1} parent=11 // pred_check_branch
        %146 = sbr.rel (%p144) target = $region20
      $region19: #{adap_conv_pallas.1} parent=11 // pred_region
        _
      $region20: #{adap_conv_pallas.1} parent=11 // pred_fallthru
        _
      // Predicated region
      $region21: #{adap_conv_pallas.1} parent=11 // pred_check
        %p147 = pneg %p100
      $region22: #{adap_conv_pallas.1} parent=11 // pred_check_branch
        %149 = sbr.rel (%p147) target = $region24
      $region23: #{adap_conv_pallas.1} parent=11 // pred_region
        _
      $region24: #{adap_conv_pallas.1} parent=11 // pred_fallthru
        _
    $region12: #{adap_conv_pallas.1} parent=5 // pred_fallthru
      _
    %p150 = scmp.lt.s32.totalorder %s11, 2
    // Predicated region
    $region25: #{adap_conv_pallas.1} parent=5 // pred_check
      %p151 = pneg %p150
    $region26: #{adap_conv_pallas.1} parent=5 // pred_check_branch
      %153 = sbr.rel (%p151) target = $region28
    $region27: #{adap_conv_pallas.1} parent=5 // pred_region
      // Predicated region
      $region29: #{adap_conv_pallas.1} parent=27 // pred_check
        %p154 = pneg %p31
      $region30: #{adap_conv_pallas.1} parent=27 // pred_check_branch
        %156 = sbr.rel (%p154) target = $region32
      $region31: #{adap_conv_pallas.1} parent=27 // pred_region
        %p157 = scmp.lt.s32.totalorder %s11, 1
        %s158 = scalar_select %p157, %s11, 1
        %s159 = smul.addr %s158, 3
        %s160 = smul.addr %s159, 2
        %s161 = scalar_lea.vmem %s0, %s160
      $region32: #{adap_conv_pallas.1} parent=27 // pred_fallthru
        _
    $region28: #{adap_conv_pallas.1} parent=5 // pred_fallthru
      _
    %p162 = scmp.le.s32.totalorder 1, %s11
    %p163 = scmp.lt.s32.totalorder %s11, 3
    %p164 = pnand %p162, %p163
    %p165 = pneg %p164
    // Predicated region
    $region33: #{adap_conv_pallas.1} parent=5 // pred_check
      _
    $region34: #{adap_conv_pallas.1} parent=5 // pred_check_branch
      %167 = sbr.rel (%p164) target = $region36
    $region35: #{adap_conv_pallas.1} parent=5 // pred_region
      %s168 = ssub.s32 %s11, 1
      %p169 = scmp.lt.s32.totalorder %s16, 1
      %s170 = scalar_select %p169, %s16, 1
      %s171 = smul.addr %s170, 3
      %s172 = smul.addr %s171, 2
      %s173 = scalar_lea.vmem %s0, %s172
      %p174 = pneg %p37
      %p175 = pneg %p34
      %p176 = pneg %p58
      %p177 = pneg %p55
      %p178 = pneg %p79
      %p179 = pneg %p76
      %p180 = pneg %p100
      %p181 = pneg %p97
      %p182 = pneg %p126
      %p183 = pneg %p123
      %p184 = scmp.lt.s32.totalorder %s16, 1
      %s185 = scalar_select %p184, %s16, 1
      %s186 = smul.addr %s185, 3
      %s187 = smul.addr %s186, 8
      %s188 = scalar_lea.vmem %s4, %s187
      %p189 = scmp.lt.s32.totalorder %s16, 1
      %s190 = scalar_select %p189, %s16, 1
      %s191 = smul.addr %s190, 3
      %s192 = smul.addr %s191, 2
      %s193 = scalar_lea.vmem %s0, %s192
      %p194 = scmp.lt.s32.totalorder %s16, 1
      %s195 = scalar_select %p194, %s16, 1
      %s196 = smul.addr %s195, 3
      %s197 = smul.addr %s196, 8
      %s198 = scalar_lea.vmem %s4, %s197
      %v200 = vld [vmem:[%s193] sm:$0x3f]
      %v201 = vld [vmem:[%s1] sm:$0xf]
      %s202 = scalar_lea.vmem %s1, 4
      %v203 = vld [vmem:[%s202] sm:$0xf]
      %v205 = vcombine.high %v200, %v200
      %v207 = vunpack.c.l.s4 1983009808
      %v208 = vunpack.c.0.s8 %v207
      %v209 = vlaneseq
      %v210 = vshrl.u32 %v209, 7
      %v211 = vsub.s32 %v208, %v210
      %v212 = vrot.slane %v200, %v211
      %v214 = vunpack.c.l.s4 1983009808
      %v215 = vunpack.c.0.s8 %v214
      %v216 = vlaneseq
      %v217 = vshrl.u32 %v216, 7
      %v218 = vsub.s32 %v215, %v217
      %v219 = vrot.slane %v205, %v218
      %v220 = vcombine.high %v212, %v212
      %221 = vrot.lane.b32.xlu0 %v212, 127
      %v222 = vpop.permute.xlu0 %221
      %223 = vrot.lane.b32.xlu0 %v220, 127
      %v224 = vpop.permute.xlu0 %223
      %225 = vrot.lane.b32.xlu0 %v219, 127
      %v226 = vpop.permute.xlu0 %225
      %vm227 = vcmask 1039360
      %v228 = vsel %vm227, %v222, %v224
      %v229 = vsel %vm227, %v224, %v226
      %vm230 = vcmask 31744
      %v232 = vsel %vm230, %v203, 0
      %vm234 = vcmask 1041408
      %v236 = vsel %vm234, %v228, 0
      %v239 = vsel %vm234, %v229, 0
      %v242 = vsel %vm234, %v226, 0
      %244 = vmatprep.subr.bf16.mxu0 %v239
      %245 = vmatpush1.bf16.msra.mxu0 %v236
      %246 = vmatprep.subr.bf16.mxu0 0
      %247 = vmatpush1.bf16.msra.mxu0 0
      %248 = vmatprep.subr.bf16.mxu0 0
      %249 = vmatpush1.bf16.msra.mxu0 0
      %250 = vmatprep.subr.bf16.mxu0 0
      %251 = vmatpush1.bf16.msra.mxu0 0
      %252 = vmatprep.subr.bf16.mxu0 0
      %253 = vmatpush1.bf16.msra.mxu0 0
      %254 = vmatprep.subr.bf16.mxu0 0
      %255 = vmatpush1.bf16.msra.mxu0 0
      %256 = vmatprep.subr.bf16.mxu0 0
      %257 = vmatpush1.bf16.msra.mxu0 0
      %258 = vmatprep.subr.bf16.mxu0 0
      %259 = vmatpush1.bf16.msra.mxu0 0
      %260 = vmatprep.subr.bf16.mxu0 0
      %261 = vmatpush1.bf16.msra.mxu0 0
      %262 = vmatprep.subr.bf16.mxu0 0
      %263 = vmatpush1.bf16.msra.mxu0 0
      %264 = vmatprep.subr.bf16.mxu0 0
      %265 = vmatpush1.bf16.msra.mxu0 0
      %266 = vmatprep.subr.bf16.mxu0 0
      %267 = vmatpush1.bf16.msra.mxu0 0
      %268 = vmatprep.subr.bf16.mxu0 0
      %269 = vmatpush1.bf16.msra.mxu0 0
      %270 = vmatprep.subr.bf16.mxu0 0
      %271 = vmatpush1.bf16.msra.mxu0 0
      %272 = vmatprep.subr.bf16.mxu0 0
      %273 = vmatpush1.bf16.msra.mxu0 0
      %274 = vmatprep.subr.bf16.mxu0 0
      %275 = vmatpush1.bf16.msra.mxu0 0
      %276 = vmatprep.mubr.bf16.mxu0 0
      %277 = vmatmul.mubr.bf16.gmra.mrb[0].mxu0 %v232
      %v278 = vpop.f32.mrb[0].mxu0
      %v279 = vadd.f32 0.0, %v278
      %v280 = vpop.f32.mrb[0].mxu0
      %v281 = vadd.f32 0.0, %v280
      %v282 = vpop.f32.mrb[0].mxu0
      %v283 = vpop.f32.mrb[0].mxu0
      %284 = vdwg.mxu0
      %285 = vmatprep.subr.bf16.mxu0 0
      %286 = vmatpush1.bf16.msra.mxu0 %v242
      %287 = vmatprep.subr.bf16.mxu0 0
      %288 = vmatpush1.bf16.msra.mxu0 0
      %289 = vmatprep.subr.bf16.mxu0 0
      %290 = vmatpush1.bf16.msra.mxu0 0
      %291 = vmatprep.subr.bf16.mxu0 0
      %292 = vmatpush1.bf16.msra.mxu0 0
      %293 = vmatprep.subr.bf16.mxu0 0
      %294 = vmatpush1.bf16.msra.mxu0 0
      %295 = vmatprep.subr.bf16.mxu0 0
      %296 = vmatpush1.bf16.msra.mxu0 0
      %297 = vmatprep.subr.bf16.mxu0 0
      %298 = vmatpush1.bf16.msra.mxu0 0
      %299 = vmatprep.subr.bf16.mxu0 0
      %300 = vmatpush1.bf16.msra.mxu0 0
      %301 = vmatprep.subr.bf16.mxu0 0
      %302 = vmatpush1.bf16.msra.mxu0 0
      %303 = vmatprep.subr.bf16.mxu0 0
      %304 = vmatpush1.bf16.msra.mxu0 0
      %305 = vmatprep.subr.bf16.mxu0 0
      %306 = vmatpush1.bf16.msra.mxu0 0
      %307 = vmatprep.subr.bf16.mxu0 0
      %308 = vmatpush1.bf16.msra.mxu0 0
      %309 = vmatprep.subr.bf16.mxu0 0
      %310 = vmatpush1.bf16.msra.mxu0 0
      %311 = vmatprep.subr.bf16.mxu0 0
      %312 = vmatpush1.bf16.msra.mxu0 0
      %313 = vmatprep.subr.bf16.mxu0 0
      %314 = vmatpush1.bf16.msra.mxu0 0
      %315 = vmatprep.subr.bf16.mxu0 0
      %316 = vmatpush1.bf16.msra.mxu0 0
      %317 = vmatprep.mubr.bf16.mxu0 0
      %318 = vmatmul.mubr.bf16.gmra.mrb[0].mxu0 %v232
      %v319 = vpop.f32.mrb[0].mxu0
      %v320 = vadd.f32 0.0, %v319
      %v321 = vpop.f32.mrb[0].mxu0
      %v322 = vpop.f32.mrb[0].mxu0
      %v323 = vpop.f32.mrb[0].mxu0
      %324 = vdwg.mxu0
      %v326 = vsel %vm230, %v201, 0
      %v329 = vsel %vm234, %v212, 0
      %v332 = vsel %vm234, %v220, 0
      %v335 = vsel %vm234, %v219, 0
      %337 = vmatprep.subr.bf16.mxu0 %v332
      %338 = vmatpush1.bf16.msra.mxu0 %v329
      %339 = vmatprep.subr.bf16.mxu0 0
      %340 = vmatpush1.bf16.msra.mxu0 0
      %341 = vmatprep.subr.bf16.mxu0 0
      %342 = vmatpush1.bf16.msra.mxu0 0
      %343 = vmatprep.subr.bf16.mxu0 0
      %344 = vmatpush1.bf16.msra.mxu0 0
      %345 = vmatprep.subr.bf16.mxu0 0
      %346 = vmatpush1.bf16.msra.mxu0 0
      %347 = vmatprep.subr.bf16.mxu0 0
      %348 = vmatpush1.bf16.msra.mxu0 0
      %349 = vmatprep.subr.bf16.mxu0 0
      %350 = vmatpush1.bf16.msra.mxu0 0
      %351 = vmatprep.subr.bf16.mxu0 0
      %352 = vmatpush1.bf16.msra.mxu0 0
      %353 = vmatprep.subr.bf16.mxu0 0
      %354 = vmatpush1.bf16.msra.mxu0 0
      %355 = vmatprep.subr.bf16.mxu0 0
      %356 = vmatpush1.bf16.msra.mxu0 0
      %357 = vmatprep.subr.bf16.mxu0 0
      %358 = vmatpush1.bf16.msra.mxu0 0
      %359 = vmatprep.subr.bf16.mxu0 0
      %360 = vmatpush1.bf16.msra.mxu0 0
      %361 = vmatprep.subr.bf16.mxu0 0
      %362 = vmatpush1.bf16.msra.mxu0 0
      %363 = vmatprep.subr.bf16.mxu0 0
      %364 = vmatpush1.bf16.msra.mxu0 0
      %365 = vmatprep.subr.bf16.mxu0 0
      %366 = vmatpush1.bf16.msra.mxu0 0
      %367 = vmatprep.subr.bf16.mxu0 0
      %368 = vmatpush1.bf16.msra.mxu0 0
      %369 = vmatprep.mubr.bf16.mxu0 0
      %370 = vmatmul.mubr.bf16.gmra.mrb[0].mxu0 %v326
      %v371 = vpop.f32.mrb[0].mxu0
      %v372 = vadd.f32 %v279, %v371
      %v373 = vpop.f32.mrb[0].mxu0
      %v374 = vadd.f32 %v281, %v373
      %v375 = vpop.f32.mrb[0].mxu0
      %v376 = vpop.f32.mrb[0].mxu0
      %377 = vdwg.mxu0
      %378 = vmatprep.subr.bf16.mxu0 0
      %379 = vmatpush1.bf16.msra.mxu0 %v335
      %380 = vmatprep.subr.bf16.mxu0 0
      %381 = vmatpush1.bf16.msra.mxu0 0
      %382 = vmatprep.subr.bf16.mxu0 0
      %383 = vmatpush1.bf16.msra.mxu0 0
      %384 = vmatprep.subr.bf16.mxu0 0
      %385 = vmatpush1.bf16.msra.mxu0 0
      %386 = vmatprep.subr.bf16.mxu0 0
      %387 = vmatpush1.bf16.msra.mxu0 0
      %388 = vmatprep.subr.bf16.mxu0 0
      %389 = vmatpush1.bf16.msra.mxu0 0
      %390 = vmatprep.subr.bf16.mxu0 0
      %391 = vmatpush1.bf16.msra.mxu0 0
      %392 = vmatprep.subr.bf16.mxu0 0
      %393 = vmatpush1.bf16.msra.mxu0 0
      %394 = vmatprep.subr.bf16.mxu0 0
      %395 = vmatpush1.bf16.msra.mxu0 0
      %396 = vmatprep.subr.bf16.mxu0 0
      %397 = vmatpush1.bf16.msra.mxu0 0
      %398 = vmatprep.subr.bf16.mxu0 0
      %399 = vmatpush1.bf16.msra.mxu0 0
      %400 = vmatprep.subr.bf16.mxu0 0
      %401 = vmatpush1.bf16.msra.mxu0 0
      %402 = vmatprep.subr.bf16.mxu0 0
      %403 = vmatpush1.bf16.msra.mxu0 0
      %404 = vmatprep.subr.bf16.mxu0 0
      %405 = vmatpush1.bf16.msra.mxu0 0
      %406 = vmatprep.subr.bf16.mxu0 0
      %407 = vmatpush1.bf16.msra.mxu0 0
      %408 = vmatprep.subr.bf16.mxu0 0
      %409 = vmatpush1.bf16.msra.mxu0 0
      %410 = vmatprep.mubr.bf16.mxu0 0
      %411 = vmatmul.mubr.bf16.gmra.mrb[0].mxu0 %v326
      %v412 = vpop.f32.mrb[0].mxu0
      %v413 = vadd.f32 %v320, %v412
      %v414 = vpop.f32.mrb[0].mxu0
      %v415 = vpop.f32.mrb[0].mxu0
      %v416 = vpop.f32.mrb[0].mxu0
      %417 = vdwg.mxu0
      %v418 = vld [vmem:[%s193] sm:$0x3f]
      %s419 = scalar_lea.vmem %s1, 8
      %v420 = vld [vmem:[%s419] sm:$0xf]
      %v422 = vcombine.high %v418, %v418
      %v424 = vunpack.c.l.s4 1983009808
      %v425 = vunpack.c.0.s8 %v424
      %v426 = vlaneseq
      %v427 = vshrl.u32 %v426, 7
      %v428 = vsub.s32 %v425, %v427
      %v429 = vrot.slane %v418, %v428
      %v431 = vunpack.c.l.s4 1983009808
      %v432 = vunpack.c.0.s8 %v431
      %v433 = vlaneseq
      %v434 = vshrl.u32 %v433, 7
      %v435 = vsub.s32 %v432, %v434
      %v436 = vrot.slane %v422, %v435
      %v437 = vcombine.high %v429, %v429
      %438 = vrot.lane.b32.xlu0 %v429, 126
      %v439 = vpop.permute.xlu0 %438
      %440 = vrot.lane.b32.xlu0 %v437, 126
      %v441 = vpop.permute.xlu0 %440
      %442 = vrot.lane.b32.xlu0 %v436, 126
      %v443 = vpop.permute.xlu0 %442
      %vm444 = vcmask 1031168
      %v445 = vsel %vm444, %v439, %v441
      %v446 = vsel %vm444, %v441, %v443
      %v448 = vsel %vm230, %v420, 0
      %v451 = vsel %vm234, %v445, 0
      %v454 = vsel %vm234, %v446, 0
      %v457 = vsel %vm234, %v443, 0
      %459 = vmatprep.subr.bf16.mxu0 %v454
      %460 = vmatpush1.bf16.msra.mxu0 %v451
      %461 = vmatprep.subr.bf16.mxu0 0
      %462 = vmatpush1.bf16.msra.mxu0 0
      %463 = vmatprep.subr.bf16.mxu0 0
      %464 = vmatpush1.bf16.msra.mxu0 0
      %465 = vmatprep.subr.bf16.mxu0 0
      %466 = vmatpush1.bf16.msra.mxu0 0
      %467 = vmatprep.subr.bf16.mxu0 0
      %468 = vmatpush1.bf16.msra.mxu0 0
      %469 = vmatprep.subr.bf16.mxu0 0
      %470 = vmatpush1.bf16.msra.mxu0 0
      %471 = vmatprep.subr.bf16.mxu0 0
      %472 = vmatpush1.bf16.msra.mxu0 0
      %473 = vmatprep.subr.bf16.mxu0 0
      %474 = vmatpush1.bf16.msra.mxu0 0
      %475 = vmatprep.subr.bf16.mxu0 0
      %476 = vmatpush1.bf16.msra.mxu0 0
      %477 = vmatprep.subr.bf16.mxu0 0
      %478 = vmatpush1.bf16.msra.mxu0 0
      %479 = vmatprep.subr.bf16.mxu0 0
      %480 = vmatpush1.bf16.msra.mxu0 0
      %481 = vmatprep.subr.bf16.mxu0 0
      %482 = vmatpush1.bf16.msra.mxu0 0
      %483 = vmatprep.subr.bf16.mxu0 0
      %484 = vmatpush1.bf16.msra.mxu0 0
      %485 = vmatprep.subr.bf16.mxu0 0
      %486 = vmatpush1.bf16.msra.mxu0 0
      %487 = vmatprep.subr.bf16.mxu0 0
      %488 = vmatpush1.bf16.msra.mxu0 0
      %489 = vmatprep.subr.bf16.mxu0 0
      %490 = vmatpush1.bf16.msra.mxu0 0
      %491 = vmatprep.mubr.bf16.mxu0 0
      %492 = vmatmul.mubr.bf16.gmra.mrb[0].mxu0 %v448
      %v493 = vpop.f32.mrb[0].mxu0
      %v494 = vadd.f32 0.0, %v493
      %v495 = vpop.f32.mrb[0].mxu0
      %v496 = vadd.f32 0.0, %v495
      %v497 = vpop.f32.mrb[0].mxu0
      %v498 = vpop.f32.mrb[0].mxu0
      %499 = vdwg.mxu0
      %500 = vmatprep.subr.bf16.mxu0 0
      %501 = vmatpush1.bf16.msra.mxu0 %v457
      %502 = vmatprep.subr.bf16.mxu0 0
      %503 = vmatpush1.bf16.msra.mxu0 0
      %504 = vmatprep.subr.bf16.mxu0 0
      %505 = vmatpush1.bf16.msra.mxu0 0
      %506 = vmatprep.subr.bf16.mxu0 0
      %507 = vmatpush1.bf16.msra.mxu0 0
      %508 = vmatprep.subr.bf16.mxu0 0
      %509 = vmatpush1.bf16.msra.mxu0 0
      %510 = vmatprep.subr.bf16.mxu0 0
      %511 = vmatpush1.bf16.msra.mxu0 0
      %512 = vmatprep.subr.bf16.mxu0 0
      %513 = vmatpush1.bf16.msra.mxu0 0
      %514 = vmatprep.subr.bf16.mxu0 0
      %515 = vmatpush1.bf16.msra.mxu0 0
      %516 = vmatprep.subr.bf16.mxu0 0
      %517 = vmatpush1.bf16.msra.mxu0 0
      %518 = vmatprep.subr.bf16.mxu0 0
      %519 = vmatpush1.bf16.msra.mxu0 0
      %520 = vmatprep.subr.bf16.mxu0 0
      %521 = vmatpush1.bf16.msra.mxu0 0
      %522 = vmatprep.subr.bf16.mxu0 0
      %523 = vmatpush1.bf16.msra.mxu0 0
      %524 = vmatprep.subr.bf16.mxu0 0
      %525 = vmatpush1.bf16.msra.mxu0 0
      %526 = vmatprep.subr.bf16.mxu0 0
      %527 = vmatpush1.bf16.msra.mxu0 0
      %528 = vmatprep.subr.bf16.mxu0 0
      %529 = vmatpush1.bf16.msra.mxu0 0
      %530 = vmatprep.subr.bf16.mxu0 0
      %531 = vmatpush1.bf16.msra.mxu0 0
      %532 = vmatprep.mubr.bf16.mxu0 0
      %533 = vmatmul.mubr.bf16.gmra.mrb[0].mxu0 %v448
      %v534 = vpop.f32.mrb[0].mxu0
      %v535 = vadd.f32 0.0, %v534
      %v536 = vpop.f32.mrb[0].mxu0
      %v537 = vpop.f32.mrb[0].mxu0
      %v538 = vpop.f32.mrb[0].mxu0
      %539 = vdwg.mxu0
      %v540 = vadd.f32 %v372, %v494
      %v541 = vadd.f32 %v374, %v496
      %v542 = vadd.f32 %v413, %v535
      %v543 = vld [vmem:[%s193] sm:$0x3f]
      %s544 = scalar_lea.vmem %s1, 12
      %v545 = vld [vmem:[%s544] sm:$0xf]
      %v547 = vcombine.high %v543, %v543
      %v549 = vunpack.c.l.s4 1983009808
      %v550 = vunpack.c.0.s8 %v549
      %v551 = vlaneseq
      %v552 = vshrl.u32 %v551, 7
      %v553 = vsub.s32 %v550, %v552
      %v554 = vrot.slane %v543, %v553
      %v556 = vunpack.c.l.s4 1983009808
      %v557 = vunpack.c.0.s8 %v556
      %v558 = vlaneseq
      %v559 = vshrl.u32 %v558, 7
      %v560 = vsub.s32 %v557, %v559
      %v561 = vrot.slane %v547, %v560
      %v562 = vcombine.high %v554, %v554
      %563 = vrot.lane.b32.xlu0 %v554, 110
      %v564 = vpop.permute.xlu0 %563
      %565 = vrot.lane.b32.xlu0 %v562, 110
      %v566 = vpop.permute.xlu0 %565
      %567 = vrot.lane.b32.xlu0 %v561, 110
      %v568 = vpop.permute.xlu0 %567
      %vm569 = vcmask 900096
      %v570 = vsel %vm569, %v564, %v566
      %v571 = vsel %vm569, %v566, %v568
      %v573 = vsel %vm230, %v545, 0
      %v576 = vsel %vm234, %v570, 0
      %v579 = vsel %vm234, %v571, 0
      %v582 = vsel %vm234, %v568, 0
      %584 = vmatprep.subr.bf16.mxu0 %v579
      %585 = vmatpush1.bf16.msra.mxu0 %v576
      %586 = vmatprep.subr.bf16.mxu0 0
      %587 = vmatpush1.bf16.msra.mxu0 0
      %588 = vmatprep.subr.bf16.mxu0 0
      %589 = vmatpush1.bf16.msra.mxu0 0
      %590 = vmatprep.subr.bf16.mxu0 0
      %591 = vmatpush1.bf16.msra.mxu0 0
      %592 = vmatprep.subr.bf16.mxu0 0
      %593 = vmatpush1.bf16.msra.mxu0 0
      %594 = vmatprep.subr.bf16.mxu0 0
      %595 = vmatpush1.bf16.msra.mxu0 0
      %596 = vmatprep.subr.bf16.mxu0 0
      %597 = vmatpush1.bf16.msra.mxu0 0
      %598 = vmatprep.subr.bf16.mxu0 0
      %599 = vmatpush1.bf16.msra.mxu0 0
      %600 = vmatprep.subr.bf16.mxu0 0
      %601 = vmatpush1.bf16.msra.mxu0 0
      %602 = vmatprep.subr.bf16.mxu0 0
      %603 = vmatpush1.bf16.msra.mxu0 0
      %604 = vmatprep.subr.bf16.mxu0 0
      %605 = vmatpush1.bf16.msra.mxu0 0
      %606 = vmatprep.subr.bf16.mxu0 0
      %607 = vmatpush1.bf16.msra.mxu0 0
      %608 = vmatprep.subr.bf16.mxu0 0
      %609 = vmatpush1.bf16.msra.mxu0 0
      %610 = vmatprep.subr.bf16.mxu0 0
      %611 = vmatpush1.bf16.msra.mxu0 0
      %612 = vmatprep.subr.bf16.mxu0 0
      %613 = vmatpush1.bf16.msra.mxu0 0
      %614 = vmatprep.subr.bf16.mxu0 0
      %615 = vmatpush1.bf16.msra.mxu0 0
      %616 = vmatprep.mubr.bf16.mxu0 0
      %617 = vmatmul.mubr.bf16.gmra.mrb[0].mxu0 %v573
      %v618 = vpop.f32.mrb[0].mxu0
      %v619 = vadd.f32 0.0, %v618
      %v620 = vpop.f32.mrb[0].mxu0
      %v621 = vadd.f32 0.0, %v620
      %v622 = vpop.f32.mrb[0].mxu0
      %v623 = vpop.f32.mrb[0].mxu0
      %624 = vdwg.mxu0
      %625 = vmatprep.subr.bf16.mxu0 0
      %626 = vmatpush1.bf16.msra.mxu0 %v582
      %627 = vmatprep.subr.bf16.mxu0 0
      %628 = vmatpush1.bf16.msra.mxu0 0
      %629 = vmatprep.subr.bf16.mxu0 0
      %630 = vmatpush1.bf16.msra.mxu0 0
      %631 = vmatprep.subr.bf16.mxu0 0
      %632 = vmatpush1.bf16.msra.mxu0 0
      %633 = vmatprep.subr.bf16.mxu0 0
      %634 = vmatpush1.bf16.msra.mxu0 0
      %635 = vmatprep.subr.bf16.mxu0 0
      %636 = vmatpush1.bf16.msra.mxu0 0
      %637 = vmatprep.subr.bf16.mxu0 0
      %638 = vmatpush1.bf16.msra.mxu0 0
      %639 = vmatprep.subr.bf16.mxu0 0
      %640 = vmatpush1.bf16.msra.mxu0 0
      %641 = vmatprep.subr.bf16.mxu0 0
      %642 = vmatpush1.bf16.msra.mxu0 0
      %643 = vmatprep.subr.bf16.mxu0 0
      %644 = vmatpush1.bf16.msra.mxu0 0
      %645 = vmatprep.subr.bf16.mxu0 0
      %646 = vmatpush1.bf16.msra.mxu0 0
      %647 = vmatprep.subr.bf16.mxu0 0
      %648 = vmatpush1.bf16.msra.mxu0 0
      %649 = vmatprep.subr.bf16.mxu0 0
      %650 = vmatpush1.bf16.msra.mxu0 0
      %651 = vmatprep.subr.bf16.mxu0 0
      %652 = vmatpush1.bf16.msra.mxu0 0
      %653 = vmatprep.subr.bf16.mxu0 0
      %654 = vmatpush1.bf16.msra.mxu0 0
      %655 = vmatprep.subr.bf16.mxu0 0
      %656 = vmatpush1.bf16.msra.mxu0 0
      %657 = vmatprep.mubr.bf16.mxu0 0
      %658 = vmatmul.mubr.bf16.gmra.mrb[0].mxu0 %v573
      %v659 = vpop.f32.mrb[0].mxu0
      %v660 = vadd.f32 0.0, %v659
      %v661 = vpop.f32.mrb[0].mxu0
      %v662 = vpop.f32.mrb[0].mxu0
      %v663 = vpop.f32.mrb[0].mxu0
      %664 = vdwg.mxu0
      %v665 = vadd.f32 %v540, %v619
      %v666 = vadd.f32 %v541, %v621
      %v667 = vadd.f32 %v542, %v660
      %v668 = vld [vmem:[%s193] sm:$0x3f]
      %s669 = scalar_lea.vmem %s1, 16
      %v670 = vld [vmem:[%s669] sm:$0xf]
      %v672 = vcombine.high %v668, %v668
      %v674 = vunpack.c.l.s4 1983009808
      %v675 = vunpack.c.0.s8 %v674
      %v676 = vlaneseq
      %v677 = vshrl.u32 %v676, 7
      %v678 = vsub.s32 %v675, %v677
      %v679 = vrot.slane %v668, %v678
      %v681 = vunpack.c.l.s4 1983009808
      %v682 = vunpack.c.0.s8 %v681
      %v683 = vlaneseq
      %v684 = vshrl.u32 %v683, 7
      %v685 = vsub.s32 %v682, %v684
      %v686 = vrot.slane %v672, %v685
      %v687 = vcombine.high %v679, %v679
      %688 = vrot.lane.b32.xlu0 %v679, 109
      %v689 = vpop.permute.xlu0 %688
      %690 = vrot.lane.b32.xlu0 %v687, 109
      %v691 = vpop.permute.xlu0 %690
      %692 = vrot.lane.b32.xlu0 %v686, 109
      %v693 = vpop.permute.xlu0 %692
      %vm694 = vcmask 891904
      %v695 = vsel %vm694, %v689, %v691
      %v696 = vsel %vm694, %v691, %v693
      %v698 = vsel %vm230, %v670, 0
      %v701 = vsel %vm234, %v695, 0
      %v704 = vsel %vm234, %v696, 0
      %v707 = vsel %vm234, %v693, 0
      %709 = vmatprep.subr.bf16.mxu0 %v704
      %710 = vmatpush1.bf16.msra.mxu0 %v701
      %711 = vmatprep.subr.bf16.mxu0 0
      %712 = vmatpush1.bf16.msra.mxu0 0
      %713 = vmatprep.subr.bf16.mxu0 0
      %714 = vmatpush1.bf16.msra.mxu0 0
      %715 = vmatprep.subr.bf16.mxu0 0
      %716 = vmatpush1.bf16.msra.mxu0 0
      %717 = vmatprep.subr.bf16.mxu0 0
      %718 = vmatpush1.bf16.msra.mxu0 0
      %719 = vmatprep.subr.bf16.mxu0 0
      %720 = vmatpush1.bf16.msra.mxu0 0
      %721 = vmatprep.subr.bf16.mxu0 0
      %722 = vmatpush1.bf16.msra.mxu0 0
      %723 = vmatprep.subr.bf16.mxu0 0
      %724 = vmatpush1.bf16.msra.mxu0 0
      %725 = vmatprep.subr.bf16.mxu0 0
      %726 = vmatpush1.bf16.msra.mxu0 0
      %727 = vmatprep.subr.bf16.mxu0 0
      %728 = vmatpush1.bf16.msra.mxu0 0
      %729 = vmatprep.subr.bf16.mxu0 0
      %730 = vmatpush1.bf16.msra.mxu0 0
      %731 = vmatprep.subr.bf16.mxu0 0
      %732 = vmatpush1.bf16.msra.mxu0 0
      %733 = vmatprep.subr.bf16.mxu0 0
      %734 = vmatpush1.bf16.msra.mxu0 0
      %735 = vmatprep.subr.bf16.mxu0 0
      %736 = vmatpush1.bf16.msra.mxu0 0
      %737 = vmatprep.subr.bf16.mxu0 0
      %738 = vmatpush1.bf16.msra.mxu0 0
      %739 = vmatprep.subr.bf16.mxu0 0
      %740 = vmatpush1.bf16.msra.mxu0 0
      %741 = vmatprep.mubr.bf16.mxu0 0
      %742 = vmatmul.mubr.bf16.gmra.mrb[0].mxu0 %v698
      %v743 = vpop.f32.mrb[0].mxu0
      %v744 = vadd.f32 0.0, %v743
      %v745 = vpop.f32.mrb[0].mxu0
      %v746 = vadd.f32 0.0, %v745
      %v747 = vpop.f32.mrb[0].mxu0
      %v748 = vpop.f32.mrb[0].mxu0
      %749 = vdwg.mxu0
      %750 = vmatprep.subr.bf16.mxu0 0
      %751 = vmatpush1.bf16.msra.mxu0 %v707
      %752 = vmatprep.subr.bf16.mxu0 0
      %753 = vmatpush1.bf16.msra.mxu0 0
      %754 = vmatprep.subr.bf16.mxu0 0
      %755 = vmatpush1.bf16.msra.mxu0 0
      %756 = vmatprep.subr.bf16.mxu0 0
      %757 = vmatpush1.bf16.msra.mxu0 0
      %758 = vmatprep.subr.bf16.mxu0 0
      %759 = vmatpush1.bf16.msra.mxu0 0
      %760 = vmatprep.subr.bf16.mxu0 0
      %761 = vmatpush1.bf16.msra.mxu0 0
      %762 = vmatprep.subr.bf16.mxu0 0
      %763 = vmatpush1.bf16.msra.mxu0 0
      %764 = vmatprep.subr.bf16.mxu0 0
      %765 = vmatpush1.bf16.msra.mxu0 0
      %766 = vmatprep.subr.bf16.mxu0 0
      %767 = vmatpush1.bf16.msra.mxu0 0
      %768 = vmatprep.subr.bf16.mxu0 0
      %769 = vmatpush1.bf16.msra.mxu0 0
      %770 = vmatprep.subr.bf16.mxu0 0
      %771 = vmatpush1.bf16.msra.mxu0 0
      %772 = vmatprep.subr.bf16.mxu0 0
      %773 = vmatpush1.bf16.msra.mxu0 0
      %774 = vmatprep.subr.bf16.mxu0 0
      %775 = vmatpush1.bf16.msra.mxu0 0
      %776 = vmatprep.subr.bf16.mxu0 0
      %777 = vmatpush1.bf16.msra.mxu0 0
      %778 = vmatprep.subr.bf16.mxu0 0
      %779 = vmatpush1.bf16.msra.mxu0 0
      %780 = vmatprep.subr.bf16.mxu0 0
      %781 = vmatpush1.bf16.msra.mxu0 0
      %782 = vmatprep.mubr.bf16.mxu0 0
      %783 = vmatmul.mubr.bf16.gmra.mrb[0].mxu0 %v698
      %v784 = vpop.f32.mrb[0].mxu0
      %v785 = vadd.f32 0.0, %v784
      %v786 = vpop.f32.mrb[0].mxu0
      %v787 = vpop.f32.mrb[0].mxu0
      %v788 = vpop.f32.mrb[0].mxu0
      %789 = vdwg.mxu0
      %v790 = vadd.f32 %v665, %v744
      %v791 = vadd.f32 %v666, %v746
      %v792 = vadd.f32 %v667, %v785
      %v793 = vld [vmem:[%s193] sm:$0x3f]
      %s794 = scalar_lea.vmem %s1, 20
      %v795 = vld [vmem:[%s794] sm:$0xf]
      %v797 = vcombine.high %v793, %v793
      %v799 = vunpack.c.l.s4 1983009808
      %v800 = vunpack.c.0.s8 %v799
      %v801 = vlaneseq
      %v802 = vshrl.u32 %v801, 7
      %v803 = vsub.s32 %v800, %v802
      %v804 = vrot.slane %v793, %v803
      %v806 = vunpack.c.l.s4 1983009808
      %v807 = vunpack.c.0.s8 %v806
      %v808 = vlaneseq
      %v809 = vshrl.u32 %v808, 7
      %v810 = vsub.s32 %v807, %v809
      %v811 = vrot.slane %v797, %v810
      %v812 = vcombine.high %v804, %v804
      %813 = vrot.lane.b32.xlu0 %v804, 108
      %v814 = vpop.permute.xlu0 %813
      %815 = vrot.lane.b32.xlu0 %v812, 108
      %v816 = vpop.permute.xlu0 %815
      %817 = vrot.lane.b32.xlu0 %v811, 108
      %v818 = vpop.permute.xlu0 %817
      %vm819 = vcmask 883712
      %v820 = vsel %vm819, %v814, %v816
      %v821 = vsel %vm819, %v816, %v818
      %v823 = vsel %vm230, %v795, 0
      %v826 = vsel %vm234, %v820, 0
      %v829 = vsel %vm234, %v821, 0
      %v832 = vsel %vm234, %v818, 0
      %834 = vmatprep.subr.bf16.mxu0 %v829
      %835 = vmatpush1.bf16.msra.mxu0 %v826
      %836 = vmatprep.subr.bf16.mxu0 0
      %837 = vmatpush1.bf16.msra.mxu0 0
      %838 = vmatprep.subr.bf16.mxu0 0
      %839 = vmatpush1.bf16.msra.mxu0 0
      %840 = vmatprep.subr.bf16.mxu0 0
      %841 = vmatpush1.bf16.msra.mxu0 0
      %842 = vmatprep.subr.bf16.mxu0 0
      %843 = vmatpush1.bf16.msra.mxu0 0
      %844 = vmatprep.subr.bf16.mxu0 0
      %845 = vmatpush1.bf16.msra.mxu0 0
      %846 = vmatprep.subr.bf16.mxu0 0
      %847 = vmatpush1.bf16.msra.mxu0 0
      %848 = vmatprep.subr.bf16.mxu0 0
      %849 = vmatpush1.bf16.msra.mxu0 0
      %850 = vmatprep.subr.bf16.mxu0 0
      %851 = vmatpush1.bf16.msra.mxu0 0
      %852 = vmatprep.subr.bf16.mxu0 0
      %853 = vmatpush1.bf16.msra.mxu0 0
      %854 = vmatprep.subr.bf16.mxu0 0
      %855 = vmatpush1.bf16.msra.mxu0 0
      %856 = vmatprep.subr.bf16.mxu0 0
      %857 = vmatpush1.bf16.msra.mxu0 0
      %858 = vmatprep.subr.bf16.mxu0 0
      %859 = vmatpush1.bf16.msra.mxu0 0
      %860 = vmatprep.subr.bf16.mxu0 0
      %861 = vmatpush1.bf16.msra.mxu0 0
      %862 = vmatprep.subr.bf16.mxu0 0
      %863 = vmatpush1.bf16.msra.mxu0 0
      %864 = vmatprep.subr.bf16.mxu0 0
      %865 = vmatpush1.bf16.msra.mxu0 0
      %866 = vmatprep.mubr.bf16.mxu0 0
      %867 = vmatmul.mubr.bf16.gmra.mrb[0].mxu0 %v823
      %v868 = vpop.f32.mrb[0].mxu0
      %v869 = vadd.f32 0.0, %v868
      %v870 = vpop.f32.mrb[0].mxu0
      %v871 = vadd.f32 0.0, %v870
      %v872 = vpop.f32.mrb[0].mxu0
      %v873 = vpop.f32.mrb[0].mxu0
      %874 = vdwg.mxu0
      %875 = vmatprep.subr.bf16.mxu0 0
      %876 = vmatpush1.bf16.msra.mxu0 %v832
      %877 = vmatprep.subr.bf16.mxu0 0
      %878 = vmatpush1.bf16.msra.mxu0 0
      %879 = vmatprep.subr.bf16.mxu0 0
      %880 = vmatpush1.bf16.msra.mxu0 0
      %881 = vmatprep.subr.bf16.mxu0 0
      %882 = vmatpush1.bf16.msra.mxu0 0
      %883 = vmatprep.subr.bf16.mxu0 0
      %884 = vmatpush1.bf16.msra.mxu0 0
      %885 = vmatprep.subr.bf16.mxu0 0
      %886 = vmatpush1.bf16.msra.mxu0 0
      %887 = vmatprep.subr.bf16.mxu0 0
      %888 = vmatpush1.bf16.msra.mxu0 0
      %889 = vmatprep.subr.bf16.mxu0 0
      %890 = vmatpush1.bf16.msra.mxu0 0
      %891 = vmatprep.subr.bf16.mxu0 0
      %892 = vmatpush1.bf16.msra.mxu0 0
      %893 = vmatprep.subr.bf16.mxu0 0
      %894 = vmatpush1.bf16.msra.mxu0 0
      %895 = vmatprep.subr.bf16.mxu0 0
      %896 = vmatpush1.bf16.msra.mxu0 0
      %897 = vmatprep.subr.bf16.mxu0 0
      %898 = vmatpush1.bf16.msra.mxu0 0
      %899 = vmatprep.subr.bf16.mxu0 0
      %900 = vmatpush1.bf16.msra.mxu0 0
      %901 = vmatprep.subr.bf16.mxu0 0
      %902 = vmatpush1.bf16.msra.mxu0 0
      %903 = vmatprep.subr.bf16.mxu0 0
      %904 = vmatpush1.bf16.msra.mxu0 0
      %905 = vmatprep.subr.bf16.mxu0 0
      %906 = vmatpush1.bf16.msra.mxu0 0
      %907 = vmatprep.mubr.bf16.mxu0 0
      %908 = vmatmul.mubr.bf16.gmra.mrb[0].mxu0 %v823
      %v909 = vpop.f32.mrb[0].mxu0
      %v910 = vadd.f32 0.0, %v909
      %v911 = vpop.f32.mrb[0].mxu0
      %v912 = vpop.f32.mrb[0].mxu0
      %v913 = vpop.f32.mrb[0].mxu0
      %914 = vdwg.mxu0
      %v915 = vadd.f32 %v790, %v869
      %v916 = vadd.f32 %v791, %v871
      %v917 = vadd.f32 %v792, %v910
      %v918 = vld [vmem:[%s193] sm:$0x3f]
      %s919 = scalar_lea.vmem %s1, 24
      %v920 = vld [vmem:[%s919] sm:$0xf]
      %v922 = vcombine.high %v918, %v918
      %v924 = vunpack.c.l.s4 1983009808
      %v925 = vunpack.c.0.s8 %v924
      %v926 = vlaneseq
      %v927 = vshrl.u32 %v926, 7
      %v928 = vsub.s32 %v925, %v927
      %v929 = vrot.slane %v918, %v928
      %v931 = vunpack.c.l.s4 1983009808
      %v932 = vunpack.c.0.s8 %v931
      %v933 = vlaneseq
      %v934 = vshrl.u32 %v933, 7
      %v935 = vsub.s32 %v932, %v934
      %v936 = vrot.slane %v922, %v935
      %v937 = vcombine.high %v929, %v929
      %938 = vrot.lane.b32.xlu0 %v929, 92
      %v939 = vpop.permute.xlu0 %938
      %940 = vrot.lane.b32.xlu0 %v937, 92
      %v941 = vpop.permute.xlu0 %940
      %942 = vrot.lane.b32.xlu0 %v936, 92
      %v943 = vpop.permute.xlu0 %942
      %vm944 = vcmask 752640
      %v945 = vsel %vm944, %v939, %v941
      %v946 = vsel %vm944, %v941, %v943
      %v948 = vsel %vm230, %v920, 0
      %v951 = vsel %vm234, %v945, 0
      %v954 = vsel %vm234, %v946, 0
      %v957 = vsel %vm234, %v943, 0
      %959 = vmatprep.subr.bf16.mxu0 %v954
      %960 = vmatpush1.bf16.msra.mxu0 %v951
      %961 = vmatprep.subr.bf16.mxu0 0
      %962 = vmatpush1.bf16.msra.mxu0 0
      %963 = vmatprep.subr.bf16.mxu0 0
      %964 = vmatpush1.bf16.msra.mxu0 0
      %965 = vmatprep.subr.bf16.mxu0 0
      %966 = vmatpush1.bf16.msra.mxu0 0
      %967 = vmatprep.subr.bf16.mxu0 0
      %968 = vmatpush1.bf16.msra.mxu0 0
      %969 = vmatprep.subr.bf16.mxu0 0
      %970 = vmatpush1.bf16.msra.mxu0 0
      %971 = vmatprep.subr.bf16.mxu0 0
      %972 = vmatpush1.bf16.msra.mxu0 0
      %973 = vmatprep.subr.bf16.mxu0 0
      %974 = vmatpush1.bf16.msra.mxu0 0
      %975 = vmatprep.subr.bf16.mxu0 0
      %976 = vmatpush1.bf16.msra.mxu0 0
      %977 = vmatprep.subr.bf16.mxu0 0
      %978 = vmatpush1.bf16.msra.mxu0 0
      %979 = vmatprep.subr.bf16.mxu0 0
      %980 = vmatpush1.bf16.msra.mxu0 0
      %981 = vmatprep.subr.bf16.mxu0 0
      %982 = vmatpush1.bf16.msra.mxu0 0
      %983 = vmatprep.subr.bf16.mxu0 0
      %984 = vmatpush1.bf16.msra.mxu0 0
      %985 = vmatprep.subr.bf16.mxu0 0
      %986 = vmatpush1.bf16.msra.mxu0 0
      %987 = vmatprep.subr.bf16.mxu0 0
      %988 = vmatpush1.bf16.msra.mxu0 0
      %989 = vmatprep.subr.bf16.mxu0 0
      %990 = vmatpush1.bf16.msra.mxu0 0
      %991 = vmatprep.mubr.bf16.mxu0 0
      %992 = vmatmul.mubr.bf16.gmra.mrb[0].mxu0 %v948
      %v993 = vpop.f32.mrb[0].mxu0
      %v994 = vadd.f32 0.0, %v993
      %v995 = vpop.f32.mrb[0].mxu0
      %v996 = vadd.f32 0.0, %v995
      %v997 = vpop.f32.mrb[0].mxu0
      %v998 = vpop.f32.mrb[0].mxu0
      %999 = vdwg.mxu0
      %1000 = vmatprep.subr.bf16.mxu0 0
      %1001 = vmatpush1.bf16.msra.mxu0 %v957
      %1002 = vmatprep.subr.bf16.mxu0 0
      %1003 = vmatpush1.bf16.msra.mxu0 0
      %1004 = vmatprep.subr.bf16.mxu0 0
      %1005 = vmatpush1.bf16.msra.mxu0 0
      %1006 = vmatprep.subr.bf16.mxu0 0
      %1007 = vmatpush1.bf16.msra.mxu0 0
      %1008 = vmatprep.subr.bf16.mxu0 0
      %1009 = vmatpush1.bf16.msra.mxu0 0
      %1010 = vmatprep.subr.bf16.mxu0 0
      %1011 = vmatpush1.bf16.msra.mxu0 0
      %1012 = vmatprep.subr.bf16.mxu0 0
      %1013 = vmatpush1.bf16.msra.mxu0 0
      %1014 = vmatprep.subr.bf16.mxu0 0
      %1015 = vmatpush1.bf16.msra.mxu0 0
      %1016 = vmatprep.subr.bf16.mxu0 0
      %1017 = vmatpush1.bf16.msra.mxu0 0
      %1018 = vmatprep.subr.bf16.mxu0 0
      %1019 = vmatpush1.bf16.msra.mxu0 0
      %1020 = vmatprep.subr.bf16.mxu0 0
      %1021 = vmatpush1.bf16.msra.mxu0 0
      %1022 = vmatprep.subr.bf16.mxu0 0
      %1023 = vmatpush1.bf16.msra.mxu0 0
      %1024 = vmatprep.subr.bf16.mxu0 0
      %1025 = vmatpush1.bf16.msra.mxu0 0
      %1026 = vmatprep.subr.bf16.mxu0 0
      %1027 = vmatpush1.bf16.msra.mxu0 0
      %1028 = vmatprep.subr.bf16.mxu0 0
      %1029 = vmatpush1.bf16.msra.mxu0 0
      %1030 = vmatprep.subr.bf16.mxu0 0
      %1031 = vmatpush1.bf16.msra.mxu0 0
      %1032 = vmatprep.mubr.bf16.mxu0 0
      %1033 = vmatmul.mubr.bf16.gmra.mrb[0].mxu0 %v948
      %v1034 = vpop.f32.mrb[0].mxu0
      %v1035 = vadd.f32 0.0, %v1034
      %v1036 = vpop.f32.mrb[0].mxu0
      %v1037 = vpop.f32.mrb[0].mxu0
      %v1038 = vpop.f32.mrb[0].mxu0
      %1039 = vdwg.mxu0
      %v1040 = vadd.f32 %v915, %v994
      %v1041 = vadd.f32 %v916, %v996
      %v1042 = vadd.f32 %v917, %v1035
      %v1043 = vld [vmem:[%s193] sm:$0x3f]
      %s1044 = scalar_lea.vmem %s1, 28
      %v1045 = vld [vmem:[%s1044] sm:$0xf]
      %v1047 = vcombine.high %v1043, %v1043
      %v1049 = vunpack.c.l.s4 1983009808
      %v1050 = vunpack.c.0.s8 %v1049
      %v1051 = vlaneseq
      %v1052 = vshrl.u32 %v1051, 7
      %v1053 = vsub.s32 %v1050, %v1052
      %v1054 = vrot.slane %v1043, %v1053
      %v1056 = vunpack.c.l.s4 1983009808
      %v1057 = vunpack.c.0.s8 %v1056
      %v1058 = vlaneseq
      %v1059 = vshrl.u32 %v1058, 7
      %v1060 = vsub.s32 %v1057, %v1059
      %v1061 = vrot.slane %v1047, %v1060
      %v1062 = vcombine.high %v1054, %v1054
      %1063 = vrot.lane.b32.xlu0 %v1054, 91
      %v1064 = vpop.permute.xlu0 %1063
      %1065 = vrot.lane.b32.xlu0 %v1062, 91
      %v1066 = vpop.permute.xlu0 %1065
      %1067 = vrot.lane.b32.xlu0 %v1061, 91
      %v1068 = vpop.permute.xlu0 %1067
      %vm1069 = vcmask 744448
      %v1070 = vsel %vm1069, %v1064, %v1066
      %v1071 = vsel %vm1069, %v1066, %v1068
      %v1073 = vsel %vm230, %v1045, 0
      %v1076 = vsel %vm234, %v1070, 0
      %v1079 = vsel %vm234, %v1071, 0
      %v1082 = vsel %vm234, %v1068, 0
      %1084 = vmatprep.subr.bf16.mxu0 %v1079
      %1085 = vmatpush1.bf16.msra.mxu0 %v1076
      %1086 = vmatprep.subr.bf16.mxu0 0
      %1087 = vmatpush1.bf16.msra.mxu0 0
      %1088 = vmatprep.subr.bf16.mxu0 0
      %1089 = vmatpush1.bf16.msra.mxu0 0
      %1090 = vmatprep.subr.bf16.mxu0 0
      %1091 = vmatpush1.bf16.msra.mxu0 0
      %1092 = vmatprep.subr.bf16.mxu0 0
      %1093 = vmatpush1.bf16.msra.mxu0 0
      %1094 = vmatprep.subr.bf16.mxu0 0
      %1095 = vmatpush1.bf16.msra.mxu0 0
      %1096 = vmatprep.subr.bf16.mxu0 0
      %1097 = vmatpush1.bf16.msra.mxu0 0
      %1098 = vmatprep.subr.bf16.mxu0 0
      %1099 = vmatpush1.bf16.msra.mxu0 0
      %1100 = vmatprep.subr.bf16.mxu0 0
      %1101 = vmatpush1.bf16.msra.mxu0 0
      %1102 = vmatprep.subr.bf16.mxu0 0
      %1103 = vmatpush1.bf16.msra.mxu0 0
      %1104 = vmatprep.subr.bf16.mxu0 0
      %1105 = vmatpush1.bf16.msra.mxu0 0
      %1106 = vmatprep.subr.bf16.mxu0 0
      %1107 = vmatpush1.bf16.msra.mxu0 0
      %1108 = vmatprep.subr.bf16.mxu0 0
      %1109 = vmatpush1.bf16.msra.mxu0 0
      %1110 = vmatprep.subr.bf16.mxu0 0
      %1111 = vmatpush1.bf16.msra.mxu0 0
      %1112 = vmatprep.subr.bf16.mxu0 0
      %1113 = vmatpush1.bf16.msra.mxu0 0
      %1114 = vmatprep.subr.bf16.mxu0 0
      %1115 = vmatpush1.bf16.msra.mxu0 0
      %1116 = vmatprep.mubr.bf16.mxu0 0
      %1117 = vmatmul.mubr.bf16.gmra.mrb[0].mxu0 %v1073
      %v1118 = vpop.f32.mrb[0].mxu0
      %v1119 = vadd.f32 0.0, %v1118
      %v1120 = vpop.f32.mrb[0].mxu0
      %v1121 = vadd.f32 0.0, %v1120
      %v1122 = vpop.f32.mrb[0].mxu0
      %v1123 = vpop.f32.mrb[0].mxu0
      %1124 = vdwg.mxu0
      %1125 = vmatprep.subr.bf16.mxu0 0
      %1126 = vmatpush1.bf16.msra.mxu0 %v1082
      %1127 = vmatprep.subr.bf16.mxu0 0
      %1128 = vmatpush1.bf16.msra.mxu0 0
      %1129 = vmatprep.subr.bf16.mxu0 0
      %1130 = vmatpush1.bf16.msra.mxu0 0
      %1131 = vmatprep.subr.bf16.mxu0 0
      %1132 = vmatpush1.bf16.msra.mxu0 0
      %1133 = vmatprep.subr.bf16.mxu0 0
      %1134 = vmatpush1.bf16.msra.mxu0 0
      %1135 = vmatprep.subr.bf16.mxu0 0
      %1136 = vmatpush1.bf16.msra.mxu0 0
      %1137 = vmatprep.subr.bf16.mxu0 0
      %1138 = vmatpush1.bf16.msra.mxu0 0
      %1139 = vmatprep.subr.bf16.mxu0 0
      %1140 = vmatpush1.bf16.msra.mxu0 0
      %1141 = vmatprep.subr.bf16.mxu0 0
      %1142 = vmatpush1.bf16.msra.mxu0 0
      %1143 = vmatprep.subr.bf16.mxu0 0
      %1144 = vmatpush1.bf16.msra.mxu0 0
      %1145 = vmatprep.subr.bf16.mxu0 0
      %1146 = vmatpush1.bf16.msra.mxu0 0
      %1147 = vmatprep.subr.bf16.mxu0 0
      %1148 = vmatpush1.bf16.msra.mxu0 0
      %1149 = vmatprep.subr.bf16.mxu0 0
      %1150 = vmatpush1.bf16.msra.mxu0 0
      %1151 = vmatprep.subr.bf16.mxu0 0
      %1152 = vmatpush1.bf16.msra.mxu0 0
      %1153 = vmatprep.subr.bf16.mxu0 0
      %1154 = vmatpush1.bf16.msra.mxu0 0
      %1155 = vmatprep.subr.bf16.mxu0 0
      %1156 = vmatpush1.bf16.msra.mxu0 0
      %1157 = vmatprep.mubr.bf16.mxu0 0
      %1158 = vmatmul.mubr.bf16.gmra.mrb[0].mxu0 %v1073
      %v1159 = vpop.f32.mrb[0].mxu0
      %v1160 = vadd.f32 0.0, %v1159
      %v1161 = vpop.f32.mrb[0].mxu0
      %v1162 = vpop.f32.mrb[0].mxu0
      %v1163 = vpop.f32.mrb[0].mxu0
      %1164 = vdwg.mxu0
      %v1165 = vadd.f32 %v1040, %v1119
      %v1166 = vadd.f32 %v1041, %v1121
      %v1167 = vadd.f32 %v1042, %v1160
      %v1168 = vld [vmem:[%s193] sm:$0x3f]
      %s1169 = scalar_lea.vmem %s1, 32
      %v1170 = vld [vmem:[%s1169] sm:$0xf]
      %v1172 = vcombine.high %v1168, %v1168
      %v1174 = vunpack.c.l.s4 1983009808
      %v1175 = vunpack.c.0.s8 %v1174
      %v1176 = vlaneseq
      %v1177 = vshrl.u32 %v1176, 7
      %v1178 = vsub.s32 %v1175, %v1177
      %v1179 = vrot.slane %v1168, %v1178
      %v1181 = vunpack.c.l.s4 1983009808
      %v1182 = vunpack.c.0.s8 %v1181
      %v1183 = vlaneseq
      %v1184 = vshrl.u32 %v1183, 7
      %v1185 = vsub.s32 %v1182, %v1184
      %v1186 = vrot.slane %v1172, %v1185
      %v1187 = vcombine.high %v1179, %v1179
      %1188 = vrot.lane.b32.xlu0 %v1179, 90
      %v1189 = vpop.permute.xlu0 %1188
      %1190 = vrot.lane.b32.xlu0 %v1187, 90
      %v1191 = vpop.permute.xlu0 %1190
      %1192 = vrot.lane.b32.xlu0 %v1186, 90
      %v1193 = vpop.permute.xlu0 %1192
      %vm1194 = vcmask 736256
      %v1195 = vsel %vm1194, %v1189, %v1191
      %v1196 = vsel %vm1194, %v1191, %v1193
      %v1198 = vsel %vm230, %v1170, 0
      %v1201 = vsel %vm234, %v1195, 0
      %v1204 = vsel %vm234, %v1196, 0
      %v1207 = vsel %vm234, %v1193, 0
      %1209 = vmatprep.subr.bf16.mxu0 %v1204
      %1210 = vmatpush1.bf16.msra.mxu0 %v1201
      %1211 = vmatprep.subr.bf16.mxu0 0
      %1212 = vmatpush1.bf16.msra.mxu0 0
      %1213 = vmatprep.subr.bf16.mxu0 0
      %1214 = vmatpush1.bf16.msra.mxu0 0
      %1215 = vmatprep.subr.bf16.mxu0 0
      %1216 = vmatpush1.bf16.msra.mxu0 0
      %1217 = vmatprep.subr.bf16.mxu0 0
      %1218 = vmatpush1.bf16.msra.mxu0 0
      %1219 = vmatprep.subr.bf16.mxu0 0
      %1220 = vmatpush1.bf16.msra.mxu0 0
      %1221 = vmatprep.subr.bf16.mxu0 0
      %1222 = vmatpush1.bf16.msra.mxu0 0
      %1223 = vmatprep.subr.bf16.mxu0 0
      %1224 = vmatpush1.bf16.msra.mxu0 0
      %1225 = vmatprep.subr.bf16.mxu0 0
      %1226 = vmatpush1.bf16.msra.mxu0 0
      %1227 = vmatprep.subr.bf16.mxu0 0
      %1228 = vmatpush1.bf16.msra.mxu0 0
      %1229 = vmatprep.subr.bf16.mxu0 0
      %1230 = vmatpush1.bf16.msra.mxu0 0
      %1231 = vmatprep.subr.bf16.mxu0 0
      %1232 = vmatpush1.bf16.msra.mxu0 0
      %1233 = vmatprep.subr.bf16.mxu0 0
      %1234 = vmatpush1.bf16.msra.mxu0 0
      %1235 = vmatprep.subr.bf16.mxu0 0
      %1236 = vmatpush1.bf16.msra.mxu0 0
      %1237 = vmatprep.subr.bf16.mxu0 0
      %1238 = vmatpush1.bf16.msra.mxu0 0
      %1239 = vmatprep.subr.bf16.mxu0 0
      %1240 = vmatpush1.bf16.msra.mxu0 0
      %1241 = vmatprep.mubr.bf16.mxu0 0
      %1242 = vmatmul.mubr.bf16.gmra.mrb[0].mxu0 %v1198
      %v1243 = vpop.f32.mrb[0].mxu0
      %v1244 = vadd.f32 0.0, %v1243
      %v1245 = vpop.f32.mrb[0].mxu0
      %v1246 = vadd.f32 0.0, %v1245
      %v1247 = vpop.f32.mrb[0].mxu0
      %v1248 = vpop.f32.mrb[0].mxu0
      %1249 = vdwg.mxu0
      %1250 = vmatprep.subr.bf16.mxu0 0
      %1251 = vmatpush1.bf16.msra.mxu0 %v1207
      %1252 = vmatprep.subr.bf16.mxu0 0
      %1253 = vmatpush1.bf16.msra.mxu0 0
      %1254 = vmatprep.subr.bf16.mxu0 0
      %1255 = vmatpush1.bf16.msra.mxu0 0
      %1256 = vmatprep.subr.bf16.mxu0 0
      %1257 = vmatpush1.bf16.msra.mxu0 0
      %1258 = vmatprep.subr.bf16.mxu0 0
      %1259 = vmatpush1.bf16.msra.mxu0 0
      %1260 = vmatprep.subr.bf16.mxu0 0
      %1261 = vmatpush1.bf16.msra.mxu0 0
      %1262 = vmatprep.subr.bf16.mxu0 0
      %1263 = vmatpush1.bf16.msra.mxu0 0
      %1264 = vmatprep.subr.bf16.mxu0 0
      %1265 = vmatpush1.bf16.msra.mxu0 0
      %1266 = vmatprep.subr.bf16.mxu0 0
      %1267 = vmatpush1.bf16.msra.mxu0 0
      %1268 = vmatprep.subr.bf16.mxu0 0
      %1269 = vmatpush1.bf16.msra.mxu0 0
      %1270 = vmatprep.subr.bf16.mxu0 0
      %1271 = vmatpush1.bf16.msra.mxu0 0
      %1272 = vmatprep.subr.bf16.mxu0 0
      %1273 = vmatpush1.bf16.msra.mxu0 0
      %1274 = vmatprep.subr.bf16.mxu0 0
      %1275 = vmatpush1.bf16.msra.mxu0 0
      %1276 = vmatprep.subr.bf16.mxu0 0
      %1277 = vmatpush1.bf16.msra.mxu0 0
      %1278 = vmatprep.subr.bf16.mxu0 0
      %1279 = vmatpush1.bf16.msra.mxu0 0
      %1280 = vmatprep.subr.bf16.mxu0 0
      %1281 = vmatpush1.bf16.msra.mxu0 0
      %1282 = vmatprep.mubr.bf16.mxu0 0
      %1283 = vmatmul.mubr.bf16.gmra.mrb[0].mxu0 %v1198
      %v1284 = vpop.f32.mrb[0].mxu0
      %v1285 = vadd.f32 0.0, %v1284
      %v1286 = vpop.f32.mrb[0].mxu0
      %v1287 = vpop.f32.mrb[0].mxu0
      %v1288 = vpop.f32.mrb[0].mxu0
      %1289 = vdwg.mxu0
      %v1290 = vadd.f32 %v1165, %v1244
      %v1291 = vadd.f32 %v1166, %v1246
      %v1292 = vadd.f32 %v1167, %v1285
      %v1293 = vld [vmem:[%s2] sm:$0x7]
      %v1295 = vlaneseq
      %v1296 = vshrl.u32 %v1295, 7
      %v1297 = vsub.s32 0, %v1296
      %v1298 = vrot.slane %v1293, %v1297
      %v1299 = vlaneseq
      %v1300 = vshrl.u32 %v1299, 7
      %v1301 = vsub.s32 1, %v1300
      %v1302 = vrot.slane %v1293, %v1301
      %v1303 = vlaneseq
      %v1304 = vshrl.u32 %v1303, 7
      %v1305 = vsub.s32 2, %v1304
      %v1306 = vrot.slane %v1293, %v1305
      %v1310 = vmul.f32 %v1290, %v1298
      %v1311 = vmul.f32 %v1291, %v1302
      %v1312 = vmul.f32 %v1292, %v1306
      %v1313 = vadd.f32 %v1310, %v1311
      %vm1314 = vcmask 261120
      %v1315 = vsel %vm1314, %v1312, 0.0
      %v1316 = vadd.f32 %v1313, %v1315
      %1317 = vadd.xlane.f32.xlu0 %v1316
      %v1318 = vpop.xlane.xlu0 %1317
      %v1319 = vmul.f32 %v1318, 0.00390625
      %v1320 = vsub.f32 %v1290, %v1319
      %v1321 = vsub.f32 %v1291, %v1319
      %v1322 = vsub.f32 %v1292, %v1319
      %v1323 = vmul.f32 %v1320, %v1298
      %v1324 = vmul.f32 %v1321, %v1302
      %v1325 = vmul.f32 %v1322, %v1306
      %v1326 = vmul.f32 %v1323, %v1323
      %v1327 = vmul.f32 %v1324, %v1324
      %v1328 = vmul.f32 %v1325, %v1325
      %v1329 = vadd.f32 %v1326, %v1327
      %v1330 = vsel %vm1314, %v1328, 0.0
      %v1331 = vadd.f32 %v1329, %v1330
      %1332 = vadd.xlane.f32.xlu0 %v1331
      %v1333 = vpop.xlane.xlu0 %1332
      %v1334 = vmul.f32 %v1333, 0.00390625
      %v1335 = vadd.f32 %v1334, 1e-05
      %v1336 = vrsqrt.pop %v1335
      %s1337 = sld [smem:[#allocation2]]
      %v1338 = vstv %s1337
      %v1339 = vmul.f32 %v1336, %v1338
      %v1340 = vmax.f32 %v1320, 0.0
      %v1341 = vmax.f32 %v1321, 0.0
      %v1342 = vmax.f32 %v1322, 0.0
      %v1343 = vmul.f32 %v1340, %v1339
      %v1344 = vmul.f32 %v1341, %v1339
      %v1345 = vmul.f32 %v1342, %v1339
      %1346 = vst [vmem:[%s198] sm:$0xff] %v1343
      %1347 = vst [vmem:[%s198 + $0x8] sm:$0xff] %v1344
      %1348 = vst.msk [vmem:[%s198 + $0x10] sm:$0xff] %vm1314, %v1345
      %p1349 = scmp.lt.s32.totalorder %s16, 1
      %s1350 = scalar_select %p1349, %s16, 1
      %s1351 = smul.addr %s1350, 3
      %s1352 = smul.addr %s1351, 8
      %s1353 = scalar_lea.vmem %s4, %s1352
      // Predicated region
      $region37: #{adap_conv_pallas.1} parent=35 // pred_check
        %p1354 = pneg %p123
      $region38: #{adap_conv_pallas.1} parent=35 // pred_check_branch
        %1356 = sbr.rel (%p1354) target = $region40
      $region39: #{adap_conv_pallas.1} parent=35 // pred_region
        _
      $region40: #{adap_conv_pallas.1} parent=35 // pred_fallthru
        _
    $region36: #{adap_conv_pallas.1} parent=5 // pred_fallthru
      _
    %p1357 = scmp.le.s32.totalorder 2, %s11
    // Predicated region
    $region41: #{adap_conv_pallas.1} parent=5 // pred_check
      %p1358 = pneg %p1357
    $region42: #{adap_conv_pallas.1} parent=5 // pred_check_branch
      %1360 = sbr.rel (%p1358) target = $region44
    $region43: #{adap_conv_pallas.1} parent=5 // pred_region
      %s1361 = ssub.s32 %s11, 2
      // Predicated region
      $region45: #{adap_conv_pallas.1} parent=43 // pred_check
        %p1362 = pneg %p129
      $region46: #{adap_conv_pallas.1} parent=43 // pred_check_branch
        %1364 = sbr.rel (%p1362) target = $region48
      $region47: #{adap_conv_pallas.1} parent=43 // pred_region
        %p1365 = scmp.lt.s32.totalorder %s17, 1
        %s1366 = scalar_select %p1365, %s17, 1
        %s1367 = smul.addr %s1366, 3
        %s1368 = smul.addr %s1367, 8
        %s1369 = scalar_lea.vmem %s4, %s1368
      $region48: #{adap_conv_pallas.1} parent=43 // pred_fallthru
        _
    $region44: #{adap_conv_pallas.1} parent=5 // pred_fallthru
      _
  $region6: #{adap_conv_pallas.1} parent=0 // loop_footer
    %s15 = sadd.s32 1, %s11
  $region7: #{adap_conv_pallas.1} parent=0 // loop_footer_branch
    %10 = sbr.rel target = $region3
  $region8: #{adap_conv_pallas.1} parent=0 // loop_exit
    _

</llo_original>
